<compile_context>
chip_gen: v5e
topology: v5e:2x2
jax: 0.10.0
libtpu: 0.0.40
codegen_flags: <defaults>
</compile_context>

<pallas_src>
import numpy as np
import jax
import jax.numpy as jnp
from jax.experimental import pallas as pl
from jax.experimental.pallas import tpu as pltpu

# ----------------------------- configuration --------------------------------
IN_DIM = 64          # text-embedding dim (self.in_dim)
OUT_DIM = 32         # output dim (self.out_dim)
FOURIER_FREQS = 8
POSITION_DIM = FOURIER_FREQS * 2 * 4   # 64
FEAT_DIM = IN_DIM + POSITION_DIM       # 128 -> exactly one lane-dense vreg width
HIDDEN = 512
B, N = 2, 8          # batch, number of boxes
M = B * N            # flattened row count (multiple of 8 for f32 sublane tiling)


# ------------------------------ Pallas kernel --------------------------------
def box_cond_kernel(x_ref, mask_ref, null_ref,
                    w1_ref, b1_ref, w2_ref, b2_ref, w3_ref, b3_ref, o_ref):
    # masked-null blending (f32 on the VPU):  null + m * (x - null)  ==  x*m + (1-m)*null
    m = mask_ref[...]                                   # (M, 1)
    null = null_ref[...]                                # (1, FEAT_DIM), broadcasts over rows
    x = null + m * (x_ref[...] - null)                  # (M, FEAT_DIM) f32

    # Linear -> SiLU -> Linear -> SiLU -> Linear
    # MXU operands in bf16, f32 accumulation; SiLU (x*sigmoid(x)) stays in f32 (VPU + EUP).
    h = jnp.dot(x.astype(jnp.bfloat16), w1_ref[...],
                preferred_element_type=jnp.float32) + b1_ref[...]
    h = h * jax.nn.sigmoid(h)
    h = jnp.dot(h.astype(jnp.bfloat16), w2_ref[...],
                preferred_element_type=jnp.float32) + b2_ref[...]
    h = h * jax.nn.sigmoid(h)
    o = jnp.dot(h.astype(jnp.bfloat16), w3_ref[...],
                preferred_element_type=jnp.float32) + b3_ref[...]
    o_ref[...] = o.astype(o_ref.dtype)


def _vmem_spec():
    return pl.BlockSpec(memory_space=pltpu.MemorySpace.VMEM)


def box_condition_net_pallas(x_concat, mask_flat, null_concat, params):
    """x_concat: (M, FEAT_DIM) f32 pre-concatenated text||pos.
       null_concat: (1, FEAT_DIM) f32 pre-concatenated null_text||null_pos.
       params: (w1, b1, w2, b2, w3, b3) in f32; weights are cast to bf16 here."""
    w1, b1, w2, b2, w3, b3 = params
    w1b = w1.astype(jnp.bfloat16)
    w2b = w2.astype(jnp.bfloat16)
    w3b = w3.astype(jnp.bfloat16)

    # Advisory cost hint for XLA scheduling around this tiny custom call.
    flops = 2 * M * (FEAT_DIM * HIDDEN + HIDDEN * HIDDEN + HIDDEN * OUT_DIM)
    transcendentals = 2 * M * HIDDEN                         # two SiLU sigmoids
    bytes_accessed = (
        x_concat.size * 4 + mask_flat.size * 4 + null_concat.size * 4
        + (w1b.size + w2b.size + w3b.size) * 2               # bf16 weights
        + (b1.size + b2.size + b3.size) * 4
        + M * OUT_DIM * 4)

    n_in = 9
    return pl.pallas_call(
        box_cond_kernel,
        out_shape=jax.ShapeDtypeStruct((M, OUT_DIM), jnp.float32),
        in_specs=[_vmem_spec()] * n_in,
        out_specs=_vmem_spec(),
        cost_estimate=pl.CostEstimate(flops=flops,
                                      transcendentals=transcendentals,
                                      bytes_accessed=bytes_accessed),
        # TODO(synk): at realistic GLIGEN sizes (M >= a few hundred) switch to a 1-D
        # "parallel" grid over M with constant-index weight BlockSpecs so row tiles
        # pipeline and v7x's two TensorCores split the work.
    )(x_concat, mask_flat, null_concat, w1b, b1, w2b, b2, w3b, b3)


# --------------------------- plain-JAX glue ----------------------------------
def fourier_embed(boxes, num_freqs=FOURIER_FREQS, temperature=100.0):
    """GLIGEN FourierEmbedder: per freq -> [sin(f*x)(4), cos(f*x)(4)], concat over freqs."""
    Bb, Nn, C = boxes.shape                       # C == 4
    freqs = temperature ** (jnp.arange(num_freqs, dtype=jnp.float32) / num_freqs)
    xb = boxes[..., None, :] * freqs[:, None]     # (B, N, num_freqs, 4)
    emb = jnp.concatenate([jnp.sin(xb), jnp.cos(xb)], axis=-1)  # (B, N, num_freqs, 8)
    return emb.reshape(Bb, Nn, num_freqs * 2 * C)


def reference_forward(boxes, masks, text_embeddings, null_text, null_pos, params):
    """Pure-JAX (f32) replica of the PyTorch forward for validation."""
    w1, b1, w2, b2, w3, b3 = params
    m = masks[..., None]
    xyxy = fourier_embed(boxes)
    text = text_embeddings * m + (1.0 - m) * null_text.reshape(1, 1, -1)
    xyxy = xyxy * m + (1.0 - m) * null_pos.reshape(1, 1, -1)
    x = jnp.concatenate([text, xyxy], axis=-1)
    h = jax.nn.silu(x @ w1 + b1[0])
    h = jax.nn.silu(h @ w2 + b2[0])
    return h @ w3 + b3[0]


# --------------------------------- main ---------------------------------------
if __name__ == "__main__":
    key = jax.random.PRNGKey(0)
    keys = jax.random.split(key, 10)

    # inputs (deterministic)
    boxes = jax.random.uniform(keys[0], (B, N, 4), dtype=jnp.float32)           # xyxy in [0,1]
    masks = (jax.random.uniform(keys[1], (B, N)) > 0.3).astype(jnp.float32)     # some boxes null
    text_embeddings = jax.random.normal(keys[2], (B, N, IN_DIM), dtype=jnp.float32)

    # parameters (deterministic synthetic init; nulls nonzero so masking is exercised)
    def linear_init(kw, kb, fan_in, fan_out):
        bound = 1.0 / np.sqrt(fan_in)
        w = jax.random.uniform(kw, (fan_in, fan_out), minval=-bound, maxval=bound,
                               dtype=jnp.float32)
        b = jax.random.uniform(kb, (1, fan_out), minval=-bound, maxval=bound,
                               dtype=jnp.float32)
        return w, b

    w1, b1 = linear_init(keys[3], keys[4], FEAT_DIM, HIDDEN)
    w2, b2 = linear_init(keys[5], keys[6], HIDDEN, HIDDEN)
    w3, b3 = linear_init(keys[7], keys[8], HIDDEN, OUT_DIM)
    params = (w1, b1, w2, b2, w3, b3)

    null_text = 0.1 * jax.random.normal(keys[9], (IN_DIM,), dtype=jnp.float32)
    null_pos = jnp.zeros((POSITION_DIM,), dtype=jnp.float32)

    # glue: fourier embedding + flatten (B, N, .) -> (M, .) + lane-axis concat done in JAX
    xyxy_embedding = fourier_embed(boxes)                             # (B, N, POSITION_DIM)
    x_concat = jnp.concatenate(
        [text_embeddings.reshape(M, IN_DIM),
         xyxy_embedding.reshape(M, POSITION_DIM)], axis=-1)           # (M, 128) lane-dense
    mask_flat = masks.reshape(M, 1)
    null_concat = jnp.concatenate([null_text, null_pos]).reshape(1, FEAT_DIM)

    objs_flat = box_condition_net_pallas(x_concat, mask_flat, null_concat, params)
    objs = objs_flat.reshape(B, N, OUT_DIM)
    jax.block_until_ready(objs)

    # validate against the pure-JAX f32 reference of the PyTorch forward
    # (tolerance loosened because the kernel uses bf16 MXU operands with f32 accumulation)
    ref = reference_forward(boxes, masks, text_embeddings, null_text, null_pos, params)
    assert objs.shape == (B, N, OUT_DIM)
    np.testing.assert_allclose(np.asarray(objs), np.asarray(ref), rtol=2e-2, atol=2e-2)

    print("KERNEL_OK")
</pallas_src>

<mosaic_0001>
module attributes {stable_mosaic.version = 11 : i64} {
  func.func @box_cond_kernel(%arg0: memref<16x128xf32, #tpu.memory_space<vmem>>, %arg1: memref<16x1xf32, #tpu.memory_space<vmem>>, %arg2: memref<1x128xf32, #tpu.memory_space<vmem>>, %arg3: memref<128x512xbf16, #tpu.memory_space<vmem>>, %arg4: memref<1x512xf32, #tpu.memory_space<vmem>>, %arg5: memref<512x512xbf16, #tpu.memory_space<vmem>>, %arg6: memref<1x512xf32, #tpu.memory_space<vmem>>, %arg7: memref<512x32xbf16, #tpu.memory_space<vmem>>, %arg8: memref<1x32xf32, #tpu.memory_space<vmem>>, %arg9: memref<16x32xf32, #tpu.memory_space<vmem>>) attributes {dimension_semantics = [], scalar_prefetch = 0 : i64, scratch_operands = 0 : i64, tpu.core_type = #tpu.core_type<tc>} {
    %c0 = arith.constant 0 : index
    %c0_0 = arith.constant 0 : index
    %0 = vector.load %arg1[%c0, %c0_0] : memref<16x1xf32, #tpu.memory_space<vmem>>, vector<16x1xf32>
    %c0_1 = arith.constant 0 : index
    %c0_2 = arith.constant 0 : index
    %1 = vector.load %arg2[%c0_1, %c0_2] : memref<1x128xf32, #tpu.memory_space<vmem>>, vector<1x128xf32>
    %c0_3 = arith.constant 0 : index
    %c0_4 = arith.constant 0 : index
    %2 = vector.load %arg0[%c0_3, %c0_4] : memref<16x128xf32, #tpu.memory_space<vmem>>, vector<16x128xf32>
    %3 = vector.broadcast %1 : vector<1x128xf32> to vector<16x128xf32>
    %4 = arith.subf %2, %3 : vector<16x128xf32>
    %5 = vector.broadcast %0 : vector<16x1xf32> to vector<16x128xf32>
    %6 = arith.mulf %5, %4 : vector<16x128xf32>
    %7 = vector.broadcast %1 : vector<1x128xf32> to vector<16x128xf32>
    %8 = arith.addf %7, %6 : vector<16x128xf32>
    %9 = arith.truncf %8 : vector<16x128xf32> to vector<16x128xbf16>
    %c0_5 = arith.constant 0 : index
    %c0_6 = arith.constant 0 : index
    %10 = vector.load %arg3[%c0_5, %c0_6] : memref<128x512xbf16, #tpu.memory_space<vmem>>, vector<128x512xbf16>
    %cst = arith.constant dense<0.000000e+00> : vector<16x512xf32>
    %11 = tpu.matmul %9, %10, %cst {dimension_numbers = #tpu.dot_dimension_numbers<[1], [0], [0], [1], [0, 0, 1, 1], [], []>} : vector<16x128xbf16>, vector<128x512xbf16>, vector<16x512xf32> -> vector<16x512xf32>
    %c0_7 = arith.constant 0 : index
    %c0_8 = arith.constant 0 : index
    %12 = vector.load %arg4[%c0_7, %c0_8] : memref<1x512xf32, #tpu.memory_space<vmem>>, vector<1x512xf32>
    %13 = vector.broadcast %12 : vector<1x512xf32> to vector<16x512xf32>
    %14 = arith.addf %11, %13 : vector<16x512xf32>
    %15 = arith.negf %14 : vector<16x512xf32>
    %16 = math.exp %15 : vector<16x512xf32>
    %cst_9 = arith.constant 1.000000e+00 : f32
    %17 = vector.broadcast %cst_9 : f32 to vector<16x512xf32>
    %18 = arith.addf %17, %16 : vector<16x512xf32>
    %19 = arith.divf %17, %18 : vector<16x512xf32>
    %20 = arith.mulf %14, %19 : vector<16x512xf32>
    %21 = arith.truncf %20 : vector<16x512xf32> to vector<16x512xbf16>
    %c0_10 = arith.constant 0 : index
    %c0_11 = arith.constant 0 : index
    %22 = vector.load %arg5[%c0_10, %c0_11] : memref<512x512xbf16, #tpu.memory_space<vmem>>, vector<512x512xbf16>
    %cst_12 = arith.constant dense<0.000000e+00> : vector<16x512xf32>
    %23 = tpu.matmul %21, %22, %cst_12 {dimension_numbers = #tpu.dot_dimension_numbers<[1], [0], [0], [1], [0, 0, 1, 1], [], []>} : vector<16x512xbf16>, vector<512x512xbf16>, vector<16x512xf32> -> vector<16x512xf32>
    %c0_13 = arith.constant 0 : index
    %c0_14 = arith.constant 0 : index
    %24 = vector.load %arg6[%c0_13, %c0_14] : memref<1x512xf32, #tpu.memory_space<vmem>>, vector<1x512xf32>
    %25 = vector.broadcast %24 : vector<1x512xf32> to vector<16x512xf32>
    %26 = arith.addf %23, %25 : vector<16x512xf32>
    %27 = arith.negf %26 : vector<16x512xf32>
    %28 = math.exp %27 : vector<16x512xf32>
    %cst_15 = arith.constant 1.000000e+00 : f32
    %29 = vector.broadcast %cst_15 : f32 to vector<16x512xf32>
    %30 = arith.addf %29, %28 : vector<16x512xf32>
    %31 = arith.divf %29, %30 : vector<16x512xf32>
    %32 = arith.mulf %26, %31 : vector<16x512xf32>
    %33 = arith.truncf %32 : vector<16x512xf32> to vector<16x512xbf16>
    %c0_16 = arith.constant 0 : index
    %c0_17 = arith.constant 0 : index
    %34 = vector.load %arg7[%c0_16, %c0_17] : memref<512x32xbf16, #tpu.memory_space<vmem>>, vector<512x32xbf16>
    %cst_18 = arith.constant dense<0.000000e+00> : vector<16x32xf32>
    %35 = tpu.matmul %33, %34, %cst_18 {dimension_numbers = #tpu.dot_dimension_numbers<[1], [0], [0], [1], [0, 0, 1, 1], [], []>} : vector<16x512xbf16>, vector<512x32xbf16>, vector<16x32xf32> -> vector<16x32xf32>
    %c0_19 = arith.constant 0 : index
    %c0_20 = arith.constant 0 : index
    %36 = vector.load %arg8[%c0_19, %c0_20] : memref<1x32xf32, #tpu.memory_space<vmem>>, vector<1x32xf32>
    %37 = vector.broadcast %36 : vector<1x32xf32> to vector<16x32xf32>
    %38 = arith.addf %35, %37 : vector<16x32xf32>
    %c0_21 = arith.constant 0 : index
    %c0_22 = arith.constant 0 : index
    %39 = vector.load %arg9[%c0_21, %c0_22] : memref<16x32xf32, #tpu.memory_space<vmem>>, vector<16x32xf32>
    tpu.vector_store %arg9[%c0_21, %c0_22], %38 {strides = array<i32>} : memref<16x32xf32, #tpu.memory_space<vmem>>, vector<16x32xf32>,
    return
  }
}

</mosaic_0001>

<llo_original>
// kernel: tpu_custom_call.1
$region0: #{tpu_custom_call.1}
  #allocation0 [shape = 'u32[]', space=smem, size = 0x4, offset = 0x4, fixed_abs, tag = 'smem constant byte address 0x4 - core index']
  #allocation1 [shape = 'u32[72,128]{1,0:T(1,128)}', space=vmem, size = 0x9000, scoped, tag = 'internal scratch']
  %s0 = inlined_call_operand.vmem [shape: f32[16,128], index: 0, kind: input, shape index: {}]
  %s1 = inlined_call_operand.vmem [shape: f32[16,1], index: 1, kind: input, shape index: {}]
  %s2 = inlined_call_operand.vmem [shape: f32[1,128], index: 2, kind: input, shape index: {}]
  %s3 = inlined_call_operand.vmem [shape: bf16[128,512], index: 3, kind: input, shape index: {}]
  %s4 = inlined_call_operand.vmem [shape: f32[1,512], index: 4, kind: input, shape index: {}]
  %s5 = inlined_call_operand.hbm [shape: bf16[512,512], index: 5, kind: input, shape index: {}]
  %s6 = inlined_call_operand.vmem [shape: f32[1,512], index: 6, kind: input, shape index: {}]
  %s7 = inlined_call_operand.vmem [shape: bf16[512,32], index: 7, kind: input, shape index: {}]
  %s8 = inlined_call_operand.vmem [shape: f32[1,32], index: 8, kind: input, shape index: {}]
  %s9 = inlined_call_operand.hbm [shape: f32[16,32], index: 9, kind: output, shape index: {}]
  %s10 = sld [smem:[#allocation0]]
  $region50: #{tpu_custom_call.1} parent=0
    _
  %s12 = ssub.s32 1, %s10
  %s13 = scalar_select 0, %s12, %s10
  $region1: #{tpu_custom_call.1} parent=0
    #allocation2 [shape = 'u8[524288]{0}', space=vmem, size = 0x80000, scoped, tag = 'input window, operand 5, single buffered']
    #allocation3 [shape = 's32[1]{0}', space=sflag, size = 0x4, scoped, tag = 'scoped memory for tpu_custom_call.1']
    #allocation4 [shape = 's32[1]{0}', space=sflag, size = 0x4, scoped, tag = 'scoped memory for tpu_custom_call.1']
    #allocation5 [shape = 'u8[8192]{0}', space=vmem, size = 0x2000, scoped, tag = 'output window, operand 0, single buffered']
    %14 = vsyncpa [#allocation3], 0
    %15 = vsyncpa [#allocation4], 0
    // Predicated region
    $region2: #{tpu_custom_call.1} parent=1 // pred_check
      _
    $region3: #{tpu_custom_call.1} parent=1 // pred_check_branch
      %17 = sbr.rel (0) target = $region5
    $region4: #{tpu_custom_call.1} parent=1 // pred_region
      _
    $region5: #{tpu_custom_call.1} parent=1 // pred_fallthru
      _
    // Predicated region
    $region6: #{tpu_custom_call.1} parent=1 // pred_check
      _
    $region7: #{tpu_custom_call.1} parent=1 // pred_check_branch
      %19 = sbr.rel (0) target = $region9
    $region8: #{tpu_custom_call.1} parent=1 // pred_region
      _
    $region9: #{tpu_custom_call.1} parent=1 // pred_fallthru
      _
    // Predicated region
    $region10: #{tpu_custom_call.1} parent=1 // pred_check
      _
    $region11: #{tpu_custom_call.1} parent=1 // pred_check_branch
      %21 = sbr.rel (0) target = $region13
    $region12: #{tpu_custom_call.1} parent=1 // pred_region
      _
    $region13: #{tpu_custom_call.1} parent=1 // pred_fallthru
      _
    // Predicated region
    $region14: #{tpu_custom_call.1} parent=1 // pred_check
      _
    $region15: #{tpu_custom_call.1} parent=1 // pred_check_branch
      %23 = sbr.rel (0) target = $region17
    $region16: #{tpu_custom_call.1} parent=1 // pred_region
      _
    $region17: #{tpu_custom_call.1} parent=1 // pred_fallthru
      _
    // Predicated region
    $region18: #{tpu_custom_call.1} parent=1 // pred_check
      _
    $region19: #{tpu_custom_call.1} parent=1 // pred_check_branch
      %25 = sbr.rel (0) target = $region21
    $region20: #{tpu_custom_call.1} parent=1 // pred_region
      _
    $region21: #{tpu_custom_call.1} parent=1 // pred_fallthru
      _
    // Predicated region
    $region22: #{tpu_custom_call.1} parent=1 // pred_check
      _
    $region23: #{tpu_custom_call.1} parent=1 // pred_check_branch
      %27 = sbr.rel (0) target = $region25
    $region24: #{tpu_custom_call.1} parent=1 // pred_region
      %29 = vsyncadd [#allocation3], 0
      %s30 = sshll.u32 %s5, 4
      %s31 = int_to_ptr.hbm [resolvable:$true] %s30
      %s32 = sshll.u32 [#allocation2], 4
      %s33 = int_to_ptr.vmem [resolvable:$true] %s32
      %38 = dma.hbm_to_vmem [thread:$0]  %s31, 16384, %s33, [#allocation3], 256, 256, 16
    $region25: #{tpu_custom_call.1} parent=1 // pred_fallthru
      _
    // Predicated region
    $region26: #{tpu_custom_call.1} parent=1 // pred_check
      _
    $region27: #{tpu_custom_call.1} parent=1 // pred_check_branch
      %40 = sbr.rel (0) target = $region29
    $region28: #{tpu_custom_call.1} parent=1 // pred_region
      _
    $region29: #{tpu_custom_call.1} parent=1 // pred_fallthru
      _
    // Predicated region
    $region30: #{tpu_custom_call.1} parent=1 // pred_check
      _
    $region31: #{tpu_custom_call.1} parent=1 // pred_check_branch
      %42 = sbr.rel (0) target = $region33
    $region32: #{tpu_custom_call.1} parent=1 // pred_region
      _
    $region33: #{tpu_custom_call.1} parent=1 // pred_fallthru
      _
    // Predicated region
    $region34: #{tpu_custom_call.1} parent=1 // pred_check
      _
    $region35: #{tpu_custom_call.1} parent=1 // pred_check_branch
      %44 = sbr.rel (0) target = $region37
    $region36: #{tpu_custom_call.1} parent=1 // pred_region
      _
    $region37: #{tpu_custom_call.1} parent=1 // pred_fallthru
      _
    // Predicated region
    $region38: #{tpu_custom_call.1} parent=1 // pred_check
      _
    $region39: #{tpu_custom_call.1} parent=1 // pred_check_branch
      %46 = sbr.rel (0) target = $region41
    $region40: #{tpu_custom_call.1} parent=1 // pred_region
      %48 = dma.done [#allocation3], 16384
    $region41: #{tpu_custom_call.1} parent=1 // pred_fallthru
      _
    %v49 = vld [vmem:[%s1] sm:$0xff]
    %v50 = vld [vmem:[%s1 + $0x8] sm:$0xff]
    %v51 = vld [vmem:[%s2] sm:$0x1]
    %v52 = vld [vmem:[%s0] sm:$0xff]
    %v53 = vld [vmem:[%s0 + $0x8] sm:$0xff]
    %v55 = vperm.slane %v51, 0
    %v57 = vsub.f32 %v52, %v55
    %v58 = vsub.f32 %v53, %v55
    %60 = vset.pattern.permute.xlu0 0
    %61 = vperm.xlu0 %60, %v49
    %v62 = vpop.permute.xlu0 %61
    %65 = vset.pattern.permute.xlu0 0
    %66 = vperm.xlu0 %65, %v50
    %v67 = vpop.permute.xlu0 %66
    %v69 = vmul.f32 %v62, %v57
    %v70 = vmul.f32 %v67, %v58
    %v71 = vadd.f32 %v55, %v69
    %v72 = vadd.f32 %v55, %v70
    %v73 = vpack.c.bf16 %v72, %v71
    %v74 = vld [vmem:[%s3] sm:$0xff]
    %v75 = vld [vmem:[%s3 + $0x8] sm:$0xff]
    %v76 = vld [vmem:[%s3 + $0x10] sm:$0xff]
    %v77 = vld [vmem:[%s3 + $0x18] sm:$0xff]
    %v78 = vld [vmem:[%s3 + $0x20] sm:$0xff]
    %v79 = vld [vmem:[%s3 + $0x28] sm:$0xff]
    %v80 = vld [vmem:[%s3 + $0x30] sm:$0xff]
    %v81 = vld [vmem:[%s3 + $0x38] sm:$0xff]
    %v82 = vld [vmem:[%s3 + $0x40] sm:$0xff]
    %v83 = vld [vmem:[%s3 + $0x48] sm:$0xff]
    %v84 = vld [vmem:[%s3 + $0x50] sm:$0xff]
    %v85 = vld [vmem:[%s3 + $0x58] sm:$0xff]
    %v86 = vld [vmem:[%s3 + $0x60] sm:$0xff]
    %v87 = vld [vmem:[%s3 + $0x68] sm:$0xff]
    %v88 = vld [vmem:[%s3 + $0x70] sm:$0xff]
    %v89 = vld [vmem:[%s3 + $0x78] sm:$0xff]
    %v90 = vld [vmem:[%s3 + $0x80] sm:$0xff]
    %v91 = vld [vmem:[%s3 + $0x88] sm:$0xff]
    %v92 = vld [vmem:[%s3 + $0x90] sm:$0xff]
    %v93 = vld [vmem:[%s3 + $0x98] sm:$0xff]
    %v94 = vld [vmem:[%s3 + $0xa0] sm:$0xff]
    %v95 = vld [vmem:[%s3 + $0xa8] sm:$0xff]
    %v96 = vld [vmem:[%s3 + $0xb0] sm:$0xff]
    %v97 = vld [vmem:[%s3 + $0xb8] sm:$0xff]
    %v98 = vld [vmem:[%s3 + $0xc0] sm:$0xff]
    %v99 = vld [vmem:[%s3 + $0xc8] sm:$0xff]
    %v100 = vld [vmem:[%s3 + $0xd0] sm:$0xff]
    %v101 = vld [vmem:[%s3 + $0xd8] sm:$0xff]
    %v102 = vld [vmem:[%s3 + $0xe0] sm:$0xff]
    %v103 = vld [vmem:[%s3 + $0xe8] sm:$0xff]
    %v104 = vld [vmem:[%s3 + $0xf0] sm:$0xff]
    %v105 = vld [vmem:[%s3 + $0xf8] sm:$0xff]
    %v106 = vld [vmem:[%s4] sm:$0xf]
    %v108 = vperm.slane %v106, 0
    %v109 = vperm.slane %v106, 1
    %v110 = vperm.slane %v106, 2
    %v111 = vperm.slane %v106, 3
    %v148 = vunpack.c.l.b16 %v74
    %v149 = vunpack.c.h.b16 %v74
    %v150 = vunpack.c.l.b16 %v75
    %v151 = vunpack.c.h.b16 %v75
    %v152 = vunpack.c.l.b16 %v76
    %v153 = vunpack.c.h.b16 %v76
    %v154 = vunpack.c.l.b16 %v77
    %v155 = vunpack.c.h.b16 %v77
    %v156 = vunpack.c.l.b16 %v78
    %v157 = vunpack.c.h.b16 %v78
    %v158 = vunpack.c.l.b16 %v79
    %v159 = vunpack.c.h.b16 %v79
    %v160 = vunpack.c.l.b16 %v80
    %v161 = vunpack.c.h.b16 %v80
    %v162 = vunpack.c.l.b16 %v81
    %v163 = vunpack.c.h.b16 %v81
    %v164 = vunpack.c.l.b16 %v82
    %v165 = vunpack.c.h.b16 %v82
    %v166 = vunpack.c.l.b16 %v83
    %v167 = vunpack.c.h.b16 %v83
    %v168 = vunpack.c.l.b16 %v84
    %v169 = vunpack.c.h.b16 %v84
    %v170 = vunpack.c.l.b16 %v85
    %v171 = vunpack.c.h.b16 %v85
    %v172 = vunpack.c.l.b16 %v86
    %v173 = vunpack.c.h.b16 %v86
    %v174 = vunpack.c.l.b16 %v87
    %v175 = vunpack.c.h.b16 %v87
    %v176 = vunpack.c.l.b16 %v88
    %v177 = vunpack.c.h.b16 %v88
    %v178 = vunpack.c.l.b16 %v89
    %v179 = vunpack.c.h.b16 %v89
    %v180 = vunpack.c.l.b16 %v90
    %v181 = vunpack.c.h.b16 %v90
    %v182 = vunpack.c.l.b16 %v91
    %v183 = vunpack.c.h.b16 %v91
    %v184 = vunpack.c.l.b16 %v92
    %v185 = vunpack.c.h.b16 %v92
    %v186 = vunpack.c.l.b16 %v93
    %v187 = vunpack.c.h.b16 %v93
    %v188 = vunpack.c.l.b16 %v94
    %v189 = vunpack.c.h.b16 %v94
    %v190 = vunpack.c.l.b16 %v95
    %v191 = vunpack.c.h.b16 %v95
    %v192 = vunpack.c.l.b16 %v96
    %v193 = vunpack.c.h.b16 %v96
    %v194 = vunpack.c.l.b16 %v97
    %v195 = vunpack.c.h.b16 %v97
    %v196 = vunpack.c.l.b16 %v98
    %v197 = vunpack.c.h.b16 %v98
    %v198 = vunpack.c.l.b16 %v99
    %v199 = vunpack.c.h.b16 %v99
    %v200 = vunpack.c.l.b16 %v100
    %v201 = vunpack.c.h.b16 %v100
    %v202 = vunpack.c.l.b16 %v101
    %v203 = vunpack.c.h.b16 %v101
    %v204 = vunpack.c.l.b16 %v102
    %v205 = vunpack.c.h.b16 %v102
    %v206 = vunpack.c.l.b16 %v103
    %v207 = vunpack.c.h.b16 %v103
    %v208 = vunpack.c.l.b16 %v104
    %v209 = vunpack.c.h.b16 %v104
    %v210 = vunpack.c.l.b16 %v105
    %v211 = vunpack.c.h.b16 %v105
    %v212 = vpack.c.b16 %v152, %v148
    %v213 = vpack.c.b16 %v153, %v149
    %v214 = vpack.c.b16 %v154, %v150
    %v215 = vpack.c.b16 %v155, %v151
    %v216 = vpack.c.b16 %v160, %v156
    %v217 = vpack.c.b16 %v161, %v157
    %v218 = vpack.c.b16 %v162, %v158
    %v219 = vpack.c.b16 %v163, %v159
    %v220 = vpack.c.b16 %v168, %v164
    %v221 = vpack.c.b16 %v169, %v165
    %v222 = vpack.c.b16 %v170, %v166
    %v223 = vpack.c.b16 %v171, %v167
    %v224 = vpack.c.b16 %v176, %v172
    %v225 = vpack.c.b16 %v177, %v173
    %v226 = vpack.c.b16 %v178, %v174
    %v227 = vpack.c.b16 %v179, %v175
    %v228 = vpack.c.b16 %v184, %v180
    %v229 = vpack.c.b16 %v185, %v181
    %v230 = vpack.c.b16 %v186, %v182
    %v231 = vpack.c.b16 %v187, %v183
    %v232 = vpack.c.b16 %v192, %v188
    %v233 = vpack.c.b16 %v193, %v189
    %v234 = vpack.c.b16 %v194, %v190
    %v235 = vpack.c.b16 %v195, %v191
    %v236 = vpack.c.b16 %v200, %v196
    %v237 = vpack.c.b16 %v201, %v197
    %v238 = vpack.c.b16 %v202, %v198
    %v239 = vpack.c.b16 %v203, %v199
    %v240 = vpack.c.b16 %v208, %v204
    %v241 = vpack.c.b16 %v209, %v205
    %v242 = vpack.c.b16 %v210, %v206
    %v243 = vpack.c.b16 %v211, %v207
    %276 = vmatpush.bf16.msra.mxu0 %v240
    %277 = vmatpush.bf16.msra.mxu0 %v236
    %278 = vmatpush.bf16.msra.mxu0 %v232
    %279 = vmatpush.bf16.msra.mxu0 %v228
    %280 = vmatpush.bf16.msra.mxu0 %v224
    %281 = vmatpush.bf16.msra.mxu0 %v220
    %282 = vmatpush.bf16.msra.mxu0 %v216
    %283 = vmatpush.bf16.msra.mxu0 %v212
    %284 = vmatmul.bf16.gmra.mxu0 %v73
    %v285 = vpop.f32.mrf.mxu0
    %v286 = vadd.f32 %v108, %v285
    %v287 = vpop.f32.mrf.mxu0
    %v288 = vadd.f32 %v108, %v287
    %289 = vdwg.mxu0
    %290 = vmatpush.bf16.msra.mxu0 %v241
    %291 = vmatpush.bf16.msra.mxu0 %v237
    %292 = vmatpush.bf16.msra.mxu0 %v233
    %293 = vmatpush.bf16.msra.mxu0 %v229
    %294 = vmatpush.bf16.msra.mxu0 %v225
    %295 = vmatpush.bf16.msra.mxu0 %v221
    %296 = vmatpush.bf16.msra.mxu0 %v217
    %297 = vmatpush.bf16.msra.mxu0 %v213
    %298 = vmatmul.bf16.gmra.mxu0 %v73
    %v299 = vpop.f32.mrf.mxu0
    %v300 = vadd.f32 %v109, %v299
    %v301 = vpop.f32.mrf.mxu0
    %v302 = vadd.f32 %v109, %v301
    %303 = vdwg.mxu0
    %304 = vmatpush.bf16.msra.mxu0 %v242
    %305 = vmatpush.bf16.msra.mxu0 %v238
    %306 = vmatpush.bf16.msra.mxu0 %v234
    %307 = vmatpush.bf16.msra.mxu0 %v230
    %308 = vmatpush.bf16.msra.mxu0 %v226
    %309 = vmatpush.bf16.msra.mxu0 %v222
    %310 = vmatpush.bf16.msra.mxu0 %v218
    %311 = vmatpush.bf16.msra.mxu0 %v214
    %312 = vmatmul.bf16.gmra.mxu0 %v73
    %v313 = vpop.f32.mrf.mxu0
    %v314 = vadd.f32 %v110, %v313
    %v315 = vpop.f32.mrf.mxu0
    %v316 = vadd.f32 %v110, %v315
    %317 = vdwg.mxu0
    %318 = vmatpush.bf16.msra.mxu0 %v243
    %319 = vmatpush.bf16.msra.mxu0 %v239
    %320 = vmatpush.bf16.msra.mxu0 %v235
    %321 = vmatpush.bf16.msra.mxu0 %v231
    %322 = vmatpush.bf16.msra.mxu0 %v227
    %323 = vmatpush.bf16.msra.mxu0 %v223
    %324 = vmatpush.bf16.msra.mxu0 %v219
    %325 = vmatpush.bf16.msra.mxu0 %v215
    %326 = vmatmul.bf16.gmra.mxu0 %v73
    %v327 = vpop.f32.mrf.mxu0
    %v328 = vadd.f32 %v111, %v327
    %v329 = vpop.f32.mrf.mxu0
    %v330 = vadd.f32 %v111, %v329
    %331 = vdwg.mxu0
    %v332 = vxor.u32 %v286, 2147483648
    %v333 = vxor.u32 %v300, 2147483648
    %v334 = vxor.u32 %v314, 2147483648
    %v335 = vxor.u32 %v328, 2147483648
    %v336 = vxor.u32 %v288, 2147483648
    %v337 = vxor.u32 %v302, 2147483648
    %v338 = vxor.u32 %v316, 2147483648
    %v339 = vxor.u32 %v330, 2147483648
    %v340 = vmul.f32 %v332, 1.442695
    %v341 = vpow.pop %v340
    %v342 = vmul.f32 %v333, 1.442695
    %v343 = vpow.pop %v342
    %v344 = vmul.f32 %v334, 1.442695
    %v345 = vpow.pop %v344
    %v346 = vmul.f32 %v335, 1.442695
    %v347 = vpow.pop %v346
    %v348 = vmul.f32 %v336, 1.442695
    %v349 = vpow.pop %v348
    %v350 = vmul.f32 %v337, 1.442695
    %v351 = vpow.pop %v350
    %v352 = vmul.f32 %v338, 1.442695
    %v353 = vpow.pop %v352
    %v354 = vmul.f32 %v339, 1.442695
    %v355 = vpow.pop %v354
    %v356 = vadd.f32 %v341, 1.0
    %v357 = vadd.f32 %v343, 1.0
    %v358 = vadd.f32 %v345, 1.0
    %v359 = vadd.f32 %v347, 1.0
    %v360 = vadd.f32 %v349, 1.0
    %v361 = vadd.f32 %v351, 1.0
    %v362 = vadd.f32 %v353, 1.0
    %v363 = vadd.f32 %v355, 1.0
    %v364 = vrcp.pop %v356
    %v365 = vmul.f32 %v356, %v364
    %v366 = vsub.f32 1.0, %v365
    %v367 = vmul.f32 %v364, %v366
    %v368 = vadd.f32 %v364, %v367
    %vm369 = vweird.f32 %v356
    %vm370 = vweird.f32 %v364
    %vm371 = vmor %vm369, %vm370
    %v372 = vsel %vm371, %v364, %v368
    %v373 = vand.u32 2147483647, %v356
    %vm374 = vcmp.eq.f32.partialorder %v373, 8.507059e+37
    %v375 = vand.u32 %v356, 2147483648
    %v376 = vor.u32 1.1754944e-38, %v375
    %v377 = vsel %vm374, %v376, %v372
    %v378 = vmul.f32 1.0, %v377
    %v379 = vrcp.pop %v357
    %v380 = vmul.f32 %v357, %v379
    %v381 = vsub.f32 1.0, %v380
    %v382 = vmul.f32 %v379, %v381
    %v383 = vadd.f32 %v379, %v382
    %vm384 = vweird.f32 %v357
    %vm385 = vweird.f32 %v379
    %vm386 = vmor %vm384, %vm385
    %v387 = vsel %vm386, %v379, %v383
    %v388 = vand.u32 2147483647, %v357
    %vm389 = vcmp.eq.f32.partialorder %v388, 8.507059e+37
    %v390 = vand.u32 %v357, 2147483648
    %v391 = vor.u32 1.1754944e-38, %v390
    %v392 = vsel %vm389, %v391, %v387
    %v393 = vmul.f32 1.0, %v392
    %v394 = vrcp.pop %v358
    %v395 = vmul.f32 %v358, %v394
    %v396 = vsub.f32 1.0, %v395
    %v397 = vmul.f32 %v394, %v396
    %v398 = vadd.f32 %v394, %v397
    %vm399 = vweird.f32 %v358
    %vm400 = vweird.f32 %v394
    %vm401 = vmor %vm399, %vm400
    %v402 = vsel %vm401, %v394, %v398
    %v403 = vand.u32 2147483647, %v358
    %vm404 = vcmp.eq.f32.partialorder %v403, 8.507059e+37
    %v405 = vand.u32 %v358, 2147483648
    %v406 = vor.u32 1.1754944e-38, %v405
    %v407 = vsel %vm404, %v406, %v402
    %v408 = vmul.f32 1.0, %v407
    %v409 = vrcp.pop %v359
    %v410 = vmul.f32 %v359, %v409
    %v411 = vsub.f32 1.0, %v410
    %v412 = vmul.f32 %v409, %v411
    %v413 = vadd.f32 %v409, %v412
    %vm414 = vweird.f32 %v359
    %vm415 = vweird.f32 %v409
    %vm416 = vmor %vm414, %vm415
    %v417 = vsel %vm416, %v409, %v413
    %v418 = vand.u32 2147483647, %v359
    %vm419 = vcmp.eq.f32.partialorder %v418, 8.507059e+37
    %v420 = vand.u32 %v359, 2147483648
    %v421 = vor.u32 1.1754944e-38, %v420
    %v422 = vsel %vm419, %v421, %v417
    %v423 = vmul.f32 1.0, %v422
    %v424 = vrcp.pop %v360
    %v425 = vmul.f32 %v360, %v424
    %v426 = vsub.f32 1.0, %v425
    %v427 = vmul.f32 %v424, %v426
    %v428 = vadd.f32 %v424, %v427
    %vm429 = vweird.f32 %v360
    %vm430 = vweird.f32 %v424
    %vm431 = vmor %vm429, %vm430
    %v432 = vsel %vm431, %v424, %v428
    %v433 = vand.u32 2147483647, %v360
    %vm434 = vcmp.eq.f32.partialorder %v433, 8.507059e+37
    %v435 = vand.u32 %v360, 2147483648
    %v436 = vor.u32 1.1754944e-38, %v435
    %v437 = vsel %vm434, %v436, %v432
    %v438 = vmul.f32 1.0, %v437
    %v439 = vrcp.pop %v361
    %v440 = vmul.f32 %v361, %v439
    %v441 = vsub.f32 1.0, %v440
    %v442 = vmul.f32 %v439, %v441
    %v443 = vadd.f32 %v439, %v442
    %vm444 = vweird.f32 %v361
    %vm445 = vweird.f32 %v439
    %vm446 = vmor %vm444, %vm445
    %v447 = vsel %vm446, %v439, %v443
    %v448 = vand.u32 2147483647, %v361
    %vm449 = vcmp.eq.f32.partialorder %v448, 8.507059e+37
    %v450 = vand.u32 %v361, 2147483648
    %v451 = vor.u32 1.1754944e-38, %v450
    %v452 = vsel %vm449, %v451, %v447
    %v453 = vmul.f32 1.0, %v452
    %v454 = vrcp.pop %v362
    %v455 = vmul.f32 %v362, %v454
    %v456 = vsub.f32 1.0, %v455
    %v457 = vmul.f32 %v454, %v456
    %v458 = vadd.f32 %v454, %v457
    %vm459 = vweird.f32 %v362
    %vm460 = vweird.f32 %v454
    %vm461 = vmor %vm459, %vm460
    %v462 = vsel %vm461, %v454, %v458
    %v463 = vand.u32 2147483647, %v362
    %vm464 = vcmp.eq.f32.partialorder %v463, 8.507059e+37
    %v465 = vand.u32 %v362, 2147483648
    %v466 = vor.u32 1.1754944e-38, %v465
    %v467 = vsel %vm464, %v466, %v462
    %v468 = vmul.f32 1.0, %v467
    %v469 = vrcp.pop %v363
    %v470 = vmul.f32 %v363, %v469
    %v471 = vsub.f32 1.0, %v470
    %v472 = vmul.f32 %v469, %v471
    %v473 = vadd.f32 %v469, %v472
    %vm474 = vweird.f32 %v363
    %vm475 = vweird.f32 %v469
    %vm476 = vmor %vm474, %vm475
    %v477 = vsel %vm476, %v469, %v473
    %v478 = vand.u32 2147483647, %v363
    %vm479 = vcmp.eq.f32.partialorder %v478, 8.507059e+37
    %v480 = vand.u32 %v363, 2147483648
    %v481 = vor.u32 1.1754944e-38, %v480
    %v482 = vsel %vm479, %v481, %v477
    %v483 = vmul.f32 1.0, %v482
    %v484 = vmul.f32 %v286, %v378
    %v485 = vmul.f32 %v300, %v393
    %v486 = vmul.f32 %v314, %v408
    %v487 = vmul.f32 %v328, %v423
    %v488 = vmul.f32 %v288, %v438
    %v489 = vmul.f32 %v302, %v453
    %v490 = vmul.f32 %v316, %v468
    %v491 = vmul.f32 %v330, %v483
    %v492 = vpack.c.bf16 %v488, %v484
    %v493 = vpack.c.bf16 %v489, %v485
    %v494 = vpack.c.bf16 %v490, %v486
    %v495 = vpack.c.bf16 %v491, %v487
    %v496 = vld [vmem:[#allocation2] sm:$0xff]
    %v497 = vld [vmem:[#allocation2 + $0x8] sm:$0xff]
    %v498 = vld [vmem:[#allocation2 + $0x10] sm:$0xff]
    %v499 = vld [vmem:[#allocation2 + $0x18] sm:$0xff]
    %v500 = vld [vmem:[#allocation2 + $0x20] sm:$0xff]
    %v501 = vld [vmem:[#allocation2 + $0x28] sm:$0xff]
    %v502 = vld [vmem:[#allocation2 + $0x30] sm:$0xff]
    %v503 = vld [vmem:[#allocation2 + $0x38] sm:$0xff]
    %v504 = vld [vmem:[#allocation2 + $0x40] sm:$0xff]
    %v505 = vld [vmem:[#allocation2 + $0x48] sm:$0xff]
    %v506 = vld [vmem:[#allocation2 + $0x50] sm:$0xff]
    %v507 = vld [vmem:[#allocation2 + $0x58] sm:$0xff]
    %v508 = vld [vmem:[#allocation2 + $0x60] sm:$0xff]
    %v509 = vld [vmem:[#allocation2 + $0x68] sm:$0xff]
    %v510 = vld [vmem:[#allocation2 + $0x70] sm:$0xff]
    %v511 = vld [vmem:[#allocation2 + $0x78] sm:$0xff]
    %v512 = vld [vmem:[#allocation2 + $0x80] sm:$0xff]
    %v513 = vld [vmem:[#allocation2 + $0x88] sm:$0xff]
    %v514 = vld [vmem:[#allocation2 + $0x90] sm:$0xff]
    %v515 = vld [vmem:[#allocation2 + $0x98] sm:$0xff]
    %v516 = vld [vmem:[#allocation2 + $0xa0] sm:$0xff]
    %v517 = vld [vmem:[#allocation2 + $0xa8] sm:$0xff]
    %v518 = vld [vmem:[#allocation2 + $0xb0] sm:$0xff]
    %v519 = vld [vmem:[#allocation2 + $0xb8] sm:$0xff]
    %v520 = vld [vmem:[#allocation2 + $0xc0] sm:$0xff]
    %v521 = vld [vmem:[#allocation2 + $0xc8] sm:$0xff]
    %v522 = vld [vmem:[#allocation2 + $0xd0] sm:$0xff]
    %v523 = vld [vmem:[#allocation2 + $0xd8] sm:$0xff]
    %v524 = vld [vmem:[#allocation2 + $0xe0] sm:$0xff]
    %v525 = vld [vmem:[#allocation2 + $0xe8] sm:$0xff]
    %v526 = vld [vmem:[#allocation2 + $0xf0] sm:$0xff]
    %v527 = vld [vmem:[#allocation2 + $0xf8] sm:$0xff]
    %v528 = vld [vmem:[#allocation2 + $0x100] sm:$0xff]
    %v529 = vld [vmem:[#allocation2 + $0x108] sm:$0xff]
    %v530 = vld [vmem:[#allocation2 + $0x110] sm:$0xff]
    %v531 = vld [vmem:[#allocation2 + $0x118] sm:$0xff]
    %v532 = vld [vmem:[#allocation2 + $0x120] sm:$0xff]
    %v533 = vld [vmem:[#allocation2 + $0x128] sm:$0xff]
    %v534 = vld [vmem:[#allocation2 + $0x130] sm:$0xff]
    %v535 = vld [vmem:[#allocation2 + $0x138] sm:$0xff]
    %v536 = vld [vmem:[#allocation2 + $0x140] sm:$0xff]
    %v537 = vld [vmem:[#allocation2 + $0x148] sm:$0xff]
    %v538 = vld [vmem:[#allocation2 + $0x150] sm:$0xff]
    %v539 = vld [vmem:[#allocation2 + $0x158] sm:$0xff]
    %v540 = vld [vmem:[#allocation2 + $0x160] sm:$0xff]
    %v541 = vld [vmem:[#allocation2 + $0x168] sm:$0xff]
    %v542 = vld [vmem:[#allocation2 + $0x170] sm:$0xff]
    %v543 = vld [vmem:[#allocation2 + $0x178] sm:$0xff]
    %v544 = vld [vmem:[#allocation2 + $0x180] sm:$0xff]
    %v545 = vld [vmem:[#allocation2 + $0x188] sm:$0xff]
    %v546 = vld [vmem:[#allocation2 + $0x190] sm:$0xff]
    %v547 = vld [vmem:[#allocation2 + $0x198] sm:$0xff]
    %v548 = vld [vmem:[#allocation2 + $0x1a0] sm:$0xff]
    %v549 = vld [vmem:[#allocation2 + $0x1a8] sm:$0xff]
    %v550 = vld [vmem:[#allocation2 + $0x1b0] sm:$0xff]
    %v551 = vld [vmem:[#allocation2 + $0x1b8] sm:$0xff]
    %v552 = vld [vmem:[#allocation2 + $0x1c0] sm:$0xff]
    %v553 = vld [vmem:[#allocation2 + $0x1c8] sm:$0xff]
    %v554 = vld [vmem:[#allocation2 + $0x1d0] sm:$0xff]
    %v555 = vld [vmem:[#allocation2 + $0x1d8] sm:$0xff]
    %v556 = vld [vmem:[#allocation2 + $0x1e0] sm:$0xff]
    %v557 = vld [vmem:[#allocation2 + $0x1e8] sm:$0xff]
    %v558 = vld [vmem:[#allocation2 + $0x1f0] sm:$0xff]
    %v559 = vld [vmem:[#allocation2 + $0x1f8] sm:$0xff]
    %v560 = vld [vmem:[#allocation2 + $0x200] sm:$0xff]
    %v561 = vld [vmem:[#allocation2 + $0x208] sm:$0xff]
    %v562 = vld [vmem:[#allocation2 + $0x210] sm:$0xff]
    %v563 = vld [vmem:[#allocation2 + $0x218] sm:$0xff]
    %v564 = vld [vmem:[#allocation2 + $0x220] sm:$0xff]
    %v565 = vld [vmem:[#allocation2 + $0x228] sm:$0xff]
    %v566 = vld [vmem:[#allocation2 + $0x230] sm:$0xff]
    %v567 = vld [vmem:[#allocation2 + $0x238] sm:$0xff]
    %v568 = vld [vmem:[#allocation2 + $0x240] sm:$0xff]
    %v569 = vld [vmem:[#allocation2 + $0x248] sm:$0xff]
    %v570 = vld [vmem:[#allocation2 + $0x250] sm:$0xff]
    %v571 = vld [vmem:[#allocation2 + $0x258] sm:$0xff]
    %v572 = vld [vmem:[#allocation2 + $0x260] sm:$0xff]
    %v573 = vld [vmem:[#allocation2 + $0x268] sm:$0xff]
    %v574 = vld [vmem:[#allocation2 + $0x270] sm:$0xff]
    %v575 = vld [vmem:[#allocation2 + $0x278] sm:$0xff]
    %v576 = vld [vmem:[#allocation2 + $0x280] sm:$0xff]
    %v577 = vld [vmem:[#allocation2 + $0x288] sm:$0xff]
    %v578 = vld [vmem:[#allocation2 + $0x290] sm:$0xff]
    %v579 = vld [vmem:[#allocation2 + $0x298] sm:$0xff]
    %v580 = vld [vmem:[#allocation2 + $0x2a0] sm:$0xff]
    %v581 = vld [vmem:[#allocation2 + $0x2a8] sm:$0xff]
    %v582 = vld [vmem:[#allocation2 + $0x2b0] sm:$0xff]
    %v583 = vld [vmem:[#allocation2 + $0x2b8] sm:$0xff]
    %v584 = vld [vmem:[#allocation2 + $0x2c0] sm:$0xff]
    %v585 = vld [vmem:[#allocation2 + $0x2c8] sm:$0xff]
    %v586 = vld [vmem:[#allocation2 + $0x2d0] sm:$0xff]
    %v587 = vld [vmem:[#allocation2 + $0x2d8] sm:$0xff]
    %v588 = vld [vmem:[#allocation2 + $0x2e0] sm:$0xff]
    %v589 = vld [vmem:[#allocation2 + $0x2e8] sm:$0xff]
    %v590 = vld [vmem:[#allocation2 + $0x2f0] sm:$0xff]
    %v591 = vld [vmem:[#allocation2 + $0x2f8] sm:$0xff]
    %v592 = vld [vmem:[#allocation2 + $0x300] sm:$0xff]
    %v593 = vld [vmem:[#allocation2 + $0x308] sm:$0xff]
    %v594 = vld [vmem:[#allocation2 + $0x310] sm:$0xff]
    %v595 = vld [vmem:[#allocation2 + $0x318] sm:$0xff]
    %v596 = vld [vmem:[#allocation2 + $0x320] sm:$0xff]
    %v597 = vld [vmem:[#allocation2 + $0x328] sm:$0xff]
    %v598 = vld [vmem:[#allocation2 + $0x330] sm:$0xff]
    %v599 = vld [vmem:[#allocation2 + $0x338] sm:$0xff]
    %v600 = vld [vmem:[#allocation2 + $0x340] sm:$0xff]
    %v601 = vld [vmem:[#allocation2 + $0x348] sm:$0xff]
    %v602 = vld [vmem:[#allocation2 + $0x350] sm:$0xff]
    %v603 = vld [vmem:[#allocation2 + $0x358] sm:$0xff]
    %v604 = vld [vmem:[#allocation2 + $0x360] sm:$0xff]
    %v605 = vld [vmem:[#allocation2 + $0x368] sm:$0xff]
    %v606 = vld [vmem:[#allocation2 + $0x370] sm:$0xff]
    %v607 = vld [vmem:[#allocation2 + $0x378] sm:$0xff]
    %v608 = vld [vmem:[#allocation2 + $0x380] sm:$0xff]
    %v609 = vld [vmem:[#allocation2 + $0x388] sm:$0xff]
    %v610 = vld [vmem:[#allocation2 + $0x390] sm:$0xff]
    %v611 = vld [vmem:[#allocation2 + $0x398] sm:$0xff]
    %v612 = vld [vmem:[#allocation2 + $0x3a0] sm:$0xff]
    %v613 = vld [vmem:[#allocation2 + $0x3a8] sm:$0xff]
    %v614 = vld [vmem:[#allocation2 + $0x3b0] sm:$0xff]
    %v615 = vld [vmem:[#allocation2 + $0x3b8] sm:$0xff]
    %v616 = vld [vmem:[#allocation2 + $0x3c0] sm:$0xff]
    %v617 = vld [vmem:[#allocation2 + $0x3c8] sm:$0xff]
    %v618 = vld [vmem:[#allocation2 + $0x3d0] sm:$0xff]
    %v619 = vld [vmem:[#allocation2 + $0x3d8] sm:$0xff]
    %v620 = vld [vmem:[#allocation2 + $0x3e0] sm:$0xff]
    %v621 = vld [vmem:[#allocation2 + $0x3e8] sm:$0xff]
    %v622 = vld [vmem:[#allocation2 + $0x3f0] sm:$0xff]
    %v623 = vld [vmem:[#allocation2 + $0x3f8] sm:$0xff]
    %v624 = vld [vmem:[%s6] sm:$0xf]
    %v626 = vperm.slane %v624, 0
    %v627 = vperm.slane %v624, 1
    %v628 = vperm.slane %v624, 2
    %v629 = vperm.slane %v624, 3
    %v762 = vunpack.c.l.b16 %v496
    %v763 = vunpack.c.h.b16 %v496
    %v764 = vunpack.c.l.b16 %v497
    %v765 = vunpack.c.h.b16 %v497
    %v766 = vunpack.c.l.b16 %v498
    %v767 = vunpack.c.h.b16 %v498
    %v768 = vunpack.c.l.b16 %v499
    %v769 = vunpack.c.h.b16 %v499
    %v770 = vunpack.c.l.b16 %v500
    %v771 = vunpack.c.h.b16 %v500
    %v772 = vunpack.c.l.b16 %v501
    %v773 = vunpack.c.h.b16 %v501
    %v774 = vunpack.c.l.b16 %v502
    %v775 = vunpack.c.h.b16 %v502
    %v776 = vunpack.c.l.b16 %v503
    %v777 = vunpack.c.h.b16 %v503
    %v778 = vunpack.c.l.b16 %v504
    %v779 = vunpack.c.h.b16 %v504
    %v780 = vunpack.c.l.b16 %v505
    %v781 = vunpack.c.h.b16 %v505
    %v782 = vunpack.c.l.b16 %v506
    %v783 = vunpack.c.h.b16 %v506
    %v784 = vunpack.c.l.b16 %v507
    %v785 = vunpack.c.h.b16 %v507
    %v786 = vunpack.c.l.b16 %v508
    %v787 = vunpack.c.h.b16 %v508
    %v788 = vunpack.c.l.b16 %v509
    %v789 = vunpack.c.h.b16 %v509
    %v790 = vunpack.c.l.b16 %v510
    %v791 = vunpack.c.h.b16 %v510
    %v792 = vunpack.c.l.b16 %v511
    %v793 = vunpack.c.h.b16 %v511
    %v794 = vunpack.c.l.b16 %v512
    %v795 = vunpack.c.h.b16 %v512
    %v796 = vunpack.c.l.b16 %v513
    %v797 = vunpack.c.h.b16 %v513
    %v798 = vunpack.c.l.b16 %v514
    %v799 = vunpack.c.h.b16 %v514
    %v800 = vunpack.c.l.b16 %v515
    %v801 = vunpack.c.h.b16 %v515
    %v802 = vunpack.c.l.b16 %v516
    %v803 = vunpack.c.h.b16 %v516
    %v804 = vunpack.c.l.b16 %v517
    %v805 = vunpack.c.h.b16 %v517
    %v806 = vunpack.c.l.b16 %v518
    %v807 = vunpack.c.h.b16 %v518
    %v808 = vunpack.c.l.b16 %v519
    %v809 = vunpack.c.h.b16 %v519
    %v810 = vunpack.c.l.b16 %v520
    %v811 = vunpack.c.h.b16 %v520
    %v812 = vunpack.c.l.b16 %v521
    %v813 = vunpack.c.h.b16 %v521
    %v814 = vunpack.c.l.b16 %v522
    %v815 = vunpack.c.h.b16 %v522
    %v816 = vunpack.c.l.b16 %v523
    %v817 = vunpack.c.h.b16 %v523
    %v818 = vunpack.c.l.b16 %v524
    %v819 = vunpack.c.h.b16 %v524
    %v820 = vunpack.c.l.b16 %v525
    %v821 = vunpack.c.h.b16 %v525
    %v822 = vunpack.c.l.b16 %v526
    %v823 = vunpack.c.h.b16 %v526
    %v824 = vunpack.c.l.b16 %v527
    %v825 = vunpack.c.h.b16 %v527
    %v826 = vunpack.c.l.b16 %v528
    %v827 = vunpack.c.h.b16 %v528
    %v828 = vunpack.c.l.b16 %v529
    %v829 = vunpack.c.h.b16 %v529
    %v830 = vunpack.c.l.b16 %v530
    %v831 = vunpack.c.h.b16 %v530
    %v832 = vunpack.c.l.b16 %v531
    %v833 = vunpack.c.h.b16 %v531
    %v834 = vunpack.c.l.b16 %v532
    %v835 = vunpack.c.h.b16 %v532
    %v836 = vunpack.c.l.b16 %v533
    %v837 = vunpack.c.h.b16 %v533
    %v838 = vunpack.c.l.b16 %v534
    %v839 = vunpack.c.h.b16 %v534
    %v840 = vunpack.c.l.b16 %v535
    %v841 = vunpack.c.h.b16 %v535
    %v842 = vunpack.c.l.b16 %v536
    %v843 = vunpack.c.h.b16 %v536
    %v844 = vunpack.c.l.b16 %v537
    %v845 = vunpack.c.h.b16 %v537
    %v846 = vunpack.c.l.b16 %v538
    %v847 = vunpack.c.h.b16 %v538
    %v848 = vunpack.c.l.b16 %v539
    %v849 = vunpack.c.h.b16 %v539
    %v850 = vunpack.c.l.b16 %v540
    %v851 = vunpack.c.h.b16 %v540
    %v852 = vunpack.c.l.b16 %v541
    %v853 = vunpack.c.h.b16 %v541
    %v854 = vunpack.c.l.b16 %v542
    %v855 = vunpack.c.h.b16 %v542
    %v856 = vunpack.c.l.b16 %v543
    %v857 = vunpack.c.h.b16 %v543
    %v858 = vunpack.c.l.b16 %v544
    %v859 = vunpack.c.h.b16 %v544
    %v860 = vunpack.c.l.b16 %v545
    %v861 = vunpack.c.h.b16 %v545
    %v862 = vunpack.c.l.b16 %v546
    %v863 = vunpack.c.h.b16 %v546
    %v864 = vunpack.c.l.b16 %v547
    %v865 = vunpack.c.h.b16 %v547
    %v866 = vunpack.c.l.b16 %v548
    %v867 = vunpack.c.h.b16 %v548
    %v868 = vunpack.c.l.b16 %v549
    %v869 = vunpack.c.h.b16 %v549
    %v870 = vunpack.c.l.b16 %v550
    %v871 = vunpack.c.h.b16 %v550
    %v872 = vunpack.c.l.b16 %v551
    %v873 = vunpack.c.h.b16 %v551
    %v874 = vunpack.c.l.b16 %v552
    %v875 = vunpack.c.h.b16 %v552
    %v876 = vunpack.c.l.b16 %v553
    %v877 = vunpack.c.h.b16 %v553
    %v878 = vunpack.c.l.b16 %v554
    %v879 = vunpack.c.h.b16 %v554
    %v880 = vunpack.c.l.b16 %v555
    %v881 = vunpack.c.h.b16 %v555
    %v882 = vunpack.c.l.b16 %v556
    %v883 = vunpack.c.h.b16 %v556
    %v884 = vunpack.c.l.b16 %v557
    %v885 = vunpack.c.h.b16 %v557
    %v886 = vunpack.c.l.b16 %v558
    %v887 = vunpack.c.h.b16 %v558
    %v888 = vunpack.c.l.b16 %v559
    %v889 = vunpack.c.h.b16 %v559
    %v890 = vunpack.c.l.b16 %v560
    %v891 = vunpack.c.h.b16 %v560
    %v892 = vunpack.c.l.b16 %v561
    %v893 = vunpack.c.h.b16 %v561
    %v894 = vunpack.c.l.b16 %v562
    %v895 = vunpack.c.h.b16 %v562
    %v896 = vunpack.c.l.b16 %v563
    %v897 = vunpack.c.h.b16 %v563
    %v898 = vunpack.c.l.b16 %v564
    %v899 = vunpack.c.h.b16 %v564
    %v900 = vunpack.c.l.b16 %v565
    %v901 = vunpack.c.h.b16 %v565
    %v902 = vunpack.c.l.b16 %v566
    %v903 = vunpack.c.h.b16 %v566
    %v904 = vunpack.c.l.b16 %v567
    %v905 = vunpack.c.h.b16 %v567
    %v906 = vunpack.c.l.b16 %v568
    %v907 = vunpack.c.h.b16 %v568
    %v908 = vunpack.c.l.b16 %v569
    %v909 = vunpack.c.h.b16 %v569
    %v910 = vunpack.c.l.b16 %v570
    %v911 = vunpack.c.h.b16 %v570
    %v912 = vunpack.c.l.b16 %v571
    %v913 = vunpack.c.h.b16 %v571
    %v914 = vunpack.c.l.b16 %v572
    %v915 = vunpack.c.h.b16 %v572
    %v916 = vunpack.c.l.b16 %v573
    %v917 = vunpack.c.h.b16 %v573
    %v918 = vunpack.c.l.b16 %v574
    %v919 = vunpack.c.h.b16 %v574
    %v920 = vunpack.c.l.b16 %v575
    %v921 = vunpack.c.h.b16 %v575
    %v922 = vunpack.c.l.b16 %v576
    %v923 = vunpack.c.h.b16 %v576
    %v924 = vunpack.c.l.b16 %v577
    %v925 = vunpack.c.h.b16 %v577
    %v926 = vunpack.c.l.b16 %v578
    %v927 = vunpack.c.h.b16 %v578
    %v928 = vunpack.c.l.b16 %v579
    %v929 = vunpack.c.h.b16 %v579
    %v930 = vunpack.c.l.b16 %v580
    %v931 = vunpack.c.h.b16 %v580
    %v932 = vunpack.c.l.b16 %v581
    %v933 = vunpack.c.h.b16 %v581
    %v934 = vunpack.c.l.b16 %v582
    %v935 = vunpack.c.h.b16 %v582
    %v936 = vunpack.c.l.b16 %v583
    %v937 = vunpack.c.h.b16 %v583
    %v938 = vunpack.c.l.b16 %v584
    %v939 = vunpack.c.h.b16 %v584
    %v940 = vunpack.c.l.b16 %v585
    %v941 = vunpack.c.h.b16 %v585
    %v942 = vunpack.c.l.b16 %v586
    %v943 = vunpack.c.h.b16 %v586
    %v944 = vunpack.c.l.b16 %v587
    %v945 = vunpack.c.h.b16 %v587
    %v946 = vunpack.c.l.b16 %v588
    %v947 = vunpack.c.h.b16 %v588
    %v948 = vunpack.c.l.b16 %v589
    %v949 = vunpack.c.h.b16 %v589
    %v950 = vunpack.c.l.b16 %v590
    %v951 = vunpack.c.h.b16 %v590
    %v952 = vunpack.c.l.b16 %v591
    %v953 = vunpack.c.h.b16 %v591
    %v954 = vunpack.c.l.b16 %v592
    %v955 = vunpack.c.h.b16 %v592
    %v956 = vunpack.c.l.b16 %v593
    %v957 = vunpack.c.h.b16 %v593
    %v958 = vunpack.c.l.b16 %v594
    %v959 = vunpack.c.h.b16 %v594
    %v960 = vunpack.c.l.b16 %v595
    %v961 = vunpack.c.h.b16 %v595
    %v962 = vunpack.c.l.b16 %v596
    %v963 = vunpack.c.h.b16 %v596
    %v964 = vunpack.c.l.b16 %v597
    %v965 = vunpack.c.h.b16 %v597
    %v966 = vunpack.c.l.b16 %v598
    %v967 = vunpack.c.h.b16 %v598
    %v968 = vunpack.c.l.b16 %v599
    %v969 = vunpack.c.h.b16 %v599
    %v970 = vunpack.c.l.b16 %v600
    %v971 = vunpack.c.h.b16 %v600
    %v972 = vunpack.c.l.b16 %v601
    %v973 = vunpack.c.h.b16 %v601
    %v974 = vunpack.c.l.b16 %v602
    %v975 = vunpack.c.h.b16 %v602
    %v976 = vunpack.c.l.b16 %v603
    %v977 = vunpack.c.h.b16 %v603
    %v978 = vunpack.c.l.b16 %v604
    %v979 = vunpack.c.h.b16 %v604
    %v980 = vunpack.c.l.b16 %v605
    %v981 = vunpack.c.h.b16 %v605
    %v982 = vunpack.c.l.b16 %v606
    %v983 = vunpack.c.h.b16 %v606
    %v984 = vunpack.c.l.b16 %v607
    %v985 = vunpack.c.h.b16 %v607
    %v986 = vunpack.c.l.b16 %v608
    %v987 = vunpack.c.h.b16 %v608
    %v988 = vunpack.c.l.b16 %v609
    %v989 = vunpack.c.h.b16 %v609
    %v990 = vunpack.c.l.b16 %v610
    %v991 = vunpack.c.h.b16 %v610
    %v992 = vunpack.c.l.b16 %v611
    %v993 = vunpack.c.h.b16 %v611
    %v994 = vunpack.c.l.b16 %v612
    %v995 = vunpack.c.h.b16 %v612
    %v996 = vunpack.c.l.b16 %v613
    %v997 = vunpack.c.h.b16 %v613
    %v998 = vunpack.c.l.b16 %v614
    %v999 = vunpack.c.h.b16 %v614
    %v1000 = vunpack.c.l.b16 %v615
    %v1001 = vunpack.c.h.b16 %v615
    %v1002 = vunpack.c.l.b16 %v616
    %v1003 = vunpack.c.h.b16 %v616
    %v1004 = vunpack.c.l.b16 %v617
    %v1005 = vunpack.c.h.b16 %v617
    %v1006 = vunpack.c.l.b16 %v618
    %v1007 = vunpack.c.h.b16 %v618
    %v1008 = vunpack.c.l.b16 %v619
    %v1009 = vunpack.c.h.b16 %v619
    %v1010 = vunpack.c.l.b16 %v620
    %v1011 = vunpack.c.h.b16 %v620
    %v1012 = vunpack.c.l.b16 %v621
    %v1013 = vunpack.c.h.b16 %v621
    %v1014 = vunpack.c.l.b16 %v622
    %v1015 = vunpack.c.h.b16 %v622
    %v1016 = vunpack.c.l.b16 %v623
    %v1017 = vunpack.c.h.b16 %v623
    %v1018 = vpack.c.b16 %v766, %v762
    %v1019 = vpack.c.b16 %v767, %v763
    %v1020 = vpack.c.b16 %v768, %v764
    %v1021 = vpack.c.b16 %v769, %v765
    %v1022 = vpack.c.b16 %v774, %v770
    %v1023 = vpack.c.b16 %v775, %v771
    %v1024 = vpack.c.b16 %v776, %v772
    %v1025 = vpack.c.b16 %v777, %v773
    %v1026 = vpack.c.b16 %v782, %v778
    %v1027 = vpack.c.b16 %v783, %v779
    %v1028 = vpack.c.b16 %v784, %v780
    %v1029 = vpack.c.b16 %v785, %v781
    %v1030 = vpack.c.b16 %v790, %v786
    %v1031 = vpack.c.b16 %v791, %v787
    %v1032 = vpack.c.b16 %v792, %v788
    %v1033 = vpack.c.b16 %v793, %v789
    %v1034 = vpack.c.b16 %v798, %v794
    %v1035 = vpack.c.b16 %v799, %v795
    %v1036 = vpack.c.b16 %v800, %v796
    %v1037 = vpack.c.b16 %v801, %v797
    %v1038 = vpack.c.b16 %v806, %v802
    %v1039 = vpack.c.b16 %v807, %v803
    %v1040 = vpack.c.b16 %v808, %v804
    %v1041 = vpack.c.b16 %v809, %v805
    %v1042 = vpack.c.b16 %v814, %v810
    %v1043 = vpack.c.b16 %v815, %v811
    %v1044 = vpack.c.b16 %v816, %v812
    %v1045 = vpack.c.b16 %v817, %v813
    %v1046 = vpack.c.b16 %v822, %v818
    %v1047 = vpack.c.b16 %v823, %v819
    %v1048 = vpack.c.b16 %v824, %v820
    %v1049 = vpack.c.b16 %v825, %v821
    %v1050 = vpack.c.b16 %v830, %v826
    %v1051 = vpack.c.b16 %v831, %v827
    %v1052 = vpack.c.b16 %v832, %v828
    %v1053 = vpack.c.b16 %v833, %v829
    %v1054 = vpack.c.b16 %v838, %v834
    %v1055 = vpack.c.b16 %v839, %v835
    %v1056 = vpack.c.b16 %v840, %v836
    %v1057 = vpack.c.b16 %v841, %v837
    %v1058 = vpack.c.b16 %v846, %v842
    %v1059 = vpack.c.b16 %v847, %v843
    %v1060 = vpack.c.b16 %v848, %v844
    %v1061 = vpack.c.b16 %v849, %v845
    %v1062 = vpack.c.b16 %v854, %v850
    %v1063 = vpack.c.b16 %v855, %v851
    %v1064 = vpack.c.b16 %v856, %v852
    %v1065 = vpack.c.b16 %v857, %v853
    %v1066 = vpack.c.b16 %v862, %v858
    %v1067 = vpack.c.b16 %v863, %v859
    %v1068 = vpack.c.b16 %v864, %v860
    %v1069 = vpack.c.b16 %v865, %v861
    %v1070 = vpack.c.b16 %v870, %v866
    %v1071 = vpack.c.b16 %v871, %v867
    %v1072 = vpack.c.b16 %v872, %v868
    %v1073 = vpack.c.b16 %v873, %v869
    %v1074 = vpack.c.b16 %v878, %v874
    %v1075 = vpack.c.b16 %v879, %v875
    %v1076 = vpack.c.b16 %v880, %v876
    %v1077 = vpack.c.b16 %v881, %v877
    %v1078 = vpack.c.b16 %v886, %v882
    %v1079 = vpack.c.b16 %v887, %v883
    %v1080 = vpack.c.b16 %v888, %v884
    %v1081 = vpack.c.b16 %v889, %v885
    %v1082 = vpack.c.b16 %v894, %v890
    %v1083 = vpack.c.b16 %v895, %v891
    %v1084 = vpack.c.b16 %v896, %v892
    %v1085 = vpack.c.b16 %v897, %v893
    %v1086 = vpack.c.b16 %v902, %v898
    %v1087 = vpack.c.b16 %v903, %v899
    %v1088 = vpack.c.b16 %v904, %v900
    %v1089 = vpack.c.b16 %v905, %v901
    %v1090 = vpack.c.b16 %v910, %v906
    %v1091 = vpack.c.b16 %v911, %v907
    %v1092 = vpack.c.b16 %v912, %v908
    %v1093 = vpack.c.b16 %v913, %v909
    %v1094 = vpack.c.b16 %v918, %v914
    %v1095 = vpack.c.b16 %v919, %v915
    %v1096 = vpack.c.b16 %v920, %v916
    %v1097 = vpack.c.b16 %v921, %v917
    %v1098 = vpack.c.b16 %v926, %v922
    %v1099 = vpack.c.b16 %v927, %v923
    %v1100 = vpack.c.b16 %v928, %v924
    %v1101 = vpack.c.b16 %v929, %v925
    %v1102 = vpack.c.b16 %v934, %v930
    %v1103 = vpack.c.b16 %v935, %v931
    %v1104 = vpack.c.b16 %v936, %v932
    %v1105 = vpack.c.b16 %v937, %v933
    %v1106 = vpack.c.b16 %v942, %v938
    %v1107 = vpack.c.b16 %v943, %v939
    %v1108 = vpack.c.b16 %v944, %v940
    %v1109 = vpack.c.b16 %v945, %v941
    %v1110 = vpack.c.b16 %v950, %v946
    %v1111 = vpack.c.b16 %v951, %v947
    %v1112 = vpack.c.b16 %v952, %v948
    %v1113 = vpack.c.b16 %v953, %v949
    %v1114 = vpack.c.b16 %v958, %v954
    %v1115 = vpack.c.b16 %v959, %v955
    %v1116 = vpack.c.b16 %v960, %v956
    %v1117 = vpack.c.b16 %v961, %v957
    %v1118 = vpack.c.b16 %v966, %v962
    %v1119 = vpack.c.b16 %v967, %v963
    %v1120 = vpack.c.b16 %v968, %v964
    %v1121 = vpack.c.b16 %v969, %v965
    %v1122 = vpack.c.b16 %v974, %v970
    %v1123 = vpack.c.b16 %v975, %v971
    %v1124 = vpack.c.b16 %v976, %v972
    %v1125 = vpack.c.b16 %v977, %v973
    %v1126 = vpack.c.b16 %v982, %v978
    %v1127 = vpack.c.b16 %v983, %v979
    %v1128 = vpack.c.b16 %v984, %v980
    %v1129 = vpack.c.b16 %v985, %v981
    %v1130 = vpack.c.b16 %v990, %v986
    %v1131 = vpack.c.b16 %v991, %v987
    %v1132 = vpack.c.b16 %v992, %v988
    %v1133 = vpack.c.b16 %v993, %v989
    %v1134 = vpack.c.b16 %v998, %v994
    %v1135 = vpack.c.b16 %v999, %v995
    %v1136 = vpack.c.b16 %v1000, %v996
    %v1137 = vpack.c.b16 %v1001, %v997
    %v1138 = vpack.c.b16 %v1006, %v1002
    %v1139 = vpack.c.b16 %v1007, %v1003
    %v1140 = vpack.c.b16 %v1008, %v1004
    %v1141 = vpack.c.b16 %v1009, %v1005
    %v1142 = vpack.c.b16 %v1014, %v1010
    %v1143 = vpack.c.b16 %v1015, %v1011
    %v1144 = vpack.c.b16 %v1016, %v1012
    %v1145 = vpack.c.b16 %v1017, %v1013
    %1274 = vmatpush.bf16.msra.mxu0 %v1046
    %1275 = vmatpush.bf16.msra.mxu0 %v1042
    %1276 = vmatpush.bf16.msra.mxu0 %v1038
    %1277 = vmatpush.bf16.msra.mxu0 %v1034
    %1278 = vmatpush.bf16.msra.mxu0 %v1030
    %1279 = vmatpush.bf16.msra.mxu0 %v1026
    %1280 = vmatpush.bf16.msra.mxu0 %v1022
    %1281 = vmatpush.bf16.msra.mxu0 %v1018
    %1282 = vmatmul.bf16.gmra.mxu0 %v492
    %v1283 = vpop.f32.mrf.mxu0
    %v1284 = vadd.f32 %v626, %v1283
    %v1285 = vpop.f32.mrf.mxu0
    %v1286 = vadd.f32 %v626, %v1285
    %1287 = vdwg.mxu0
    %1288 = vmatpush.bf16.msra.mxu0 %v1078
    %1289 = vmatpush.bf16.msra.mxu0 %v1074
    %1290 = vmatpush.bf16.msra.mxu0 %v1070
    %1291 = vmatpush.bf16.msra.mxu0 %v1066
    %1292 = vmatpush.bf16.msra.mxu0 %v1062
    %1293 = vmatpush.bf16.msra.mxu0 %v1058
    %1294 = vmatpush.bf16.msra.mxu0 %v1054
    %1295 = vmatpush.bf16.msra.mxu0 %v1050
    %1296 = vmatmul.bf16.gmra.mxu0 %v493
    %v1297 = vpop.f32.mrf.mxu0
    %v1298 = vadd.f32 %v1284, %v1297
    %v1299 = vpop.f32.mrf.mxu0
    %v1300 = vadd.f32 %v1286, %v1299
    %1301 = vdwg.mxu0
    %1302 = vmatpush.bf16.msra.mxu0 %v1110
    %1303 = vmatpush.bf16.msra.mxu0 %v1106
    %1304 = vmatpush.bf16.msra.mxu0 %v1102
    %1305 = vmatpush.bf16.msra.mxu0 %v1098
    %1306 = vmatpush.bf16.msra.mxu0 %v1094
    %1307 = vmatpush.bf16.msra.mxu0 %v1090
    %1308 = vmatpush.bf16.msra.mxu0 %v1086
    %1309 = vmatpush.bf16.msra.mxu0 %v1082
    %1310 = vmatmul.bf16.gmra.mxu0 %v494
    %v1311 = vpop.f32.mrf.mxu0
    %v1312 = vadd.f32 %v1298, %v1311
    %v1313 = vpop.f32.mrf.mxu0
    %v1314 = vadd.f32 %v1300, %v1313
    %1315 = vdwg.mxu0
    %1316 = vmatpush.bf16.msra.mxu0 %v1142
    %1317 = vmatpush.bf16.msra.mxu0 %v1138
    %1318 = vmatpush.bf16.msra.mxu0 %v1134
    %1319 = vmatpush.bf16.msra.mxu0 %v1130
    %1320 = vmatpush.bf16.msra.mxu0 %v1126
    %1321 = vmatpush.bf16.msra.mxu0 %v1122
    %1322 = vmatpush.bf16.msra.mxu0 %v1118
    %1323 = vmatpush.bf16.msra.mxu0 %v1114
    %1324 = vmatmul.bf16.gmra.mxu0 %v495
    %v1325 = vpop.f32.mrf.mxu0
    %v1326 = vadd.f32 %v1312, %v1325
    %v1327 = vpop.f32.mrf.mxu0
    %v1328 = vadd.f32 %v1314, %v1327
    %1329 = vdwg.mxu0
    %1330 = vmatpush.bf16.msra.mxu0 %v1047
    %1331 = vmatpush.bf16.msra.mxu0 %v1043
    %1332 = vmatpush.bf16.msra.mxu0 %v1039
    %1333 = vmatpush.bf16.msra.mxu0 %v1035
    %1334 = vmatpush.bf16.msra.mxu0 %v1031
    %1335 = vmatpush.bf16.msra.mxu0 %v1027
    %1336 = vmatpush.bf16.msra.mxu0 %v1023
    %1337 = vmatpush.bf16.msra.mxu0 %v1019
    %1338 = vmatmul.bf16.gmra.mxu0 %v492
    %v1339 = vpop.f32.mrf.mxu0
    %v1340 = vadd.f32 %v627, %v1339
    %v1341 = vpop.f32.mrf.mxu0
    %v1342 = vadd.f32 %v627, %v1341
    %1343 = vdwg.mxu0
    %1344 = vmatpush.bf16.msra.mxu0 %v1079
    %1345 = vmatpush.bf16.msra.mxu0 %v1075
    %1346 = vmatpush.bf16.msra.mxu0 %v1071
    %1347 = vmatpush.bf16.msra.mxu0 %v1067
    %1348 = vmatpush.bf16.msra.mxu0 %v1063
    %1349 = vmatpush.bf16.msra.mxu0 %v1059
    %1350 = vmatpush.bf16.msra.mxu0 %v1055
    %1351 = vmatpush.bf16.msra.mxu0 %v1051
    %1352 = vmatmul.bf16.gmra.mxu0 %v493
    %v1353 = vpop.f32.mrf.mxu0
    %v1354 = vadd.f32 %v1340, %v1353
    %v1355 = vpop.f32.mrf.mxu0
    %v1356 = vadd.f32 %v1342, %v1355
    %1357 = vdwg.mxu0
    %1358 = vmatpush.bf16.msra.mxu0 %v1111
    %1359 = vmatpush.bf16.msra.mxu0 %v1107
    %1360 = vmatpush.bf16.msra.mxu0 %v1103
    %1361 = vmatpush.bf16.msra.mxu0 %v1099
    %1362 = vmatpush.bf16.msra.mxu0 %v1095
    %1363 = vmatpush.bf16.msra.mxu0 %v1091
    %1364 = vmatpush.bf16.msra.mxu0 %v1087
    %1365 = vmatpush.bf16.msra.mxu0 %v1083
    %1366 = vmatmul.bf16.gmra.mxu0 %v494
    %v1367 = vpop.f32.mrf.mxu0
    %v1368 = vadd.f32 %v1354, %v1367
    %v1369 = vpop.f32.mrf.mxu0
    %v1370 = vadd.f32 %v1356, %v1369
    %1371 = vdwg.mxu0
    %1372 = vmatpush.bf16.msra.mxu0 %v1143
    %1373 = vmatpush.bf16.msra.mxu0 %v1139
    %1374 = vmatpush.bf16.msra.mxu0 %v1135
    %1375 = vmatpush.bf16.msra.mxu0 %v1131
    %1376 = vmatpush.bf16.msra.mxu0 %v1127
    %1377 = vmatpush.bf16.msra.mxu0 %v1123
    %1378 = vmatpush.bf16.msra.mxu0 %v1119
    %1379 = vmatpush.bf16.msra.mxu0 %v1115
    %1380 = vmatmul.bf16.gmra.mxu0 %v495
    %v1381 = vpop.f32.mrf.mxu0
    %v1382 = vadd.f32 %v1368, %v1381
    %v1383 = vpop.f32.mrf.mxu0
    %v1384 = vadd.f32 %v1370, %v1383
    %1385 = vdwg.mxu0
    %1386 = vmatpush.bf16.msra.mxu0 %v1048
    %1387 = vmatpush.bf16.msra.mxu0 %v1044
    %1388 = vmatpush.bf16.msra.mxu0 %v1040
    %1389 = vmatpush.bf16.msra.mxu0 %v1036
    %1390 = vmatpush.bf16.msra.mxu0 %v1032
    %1391 = vmatpush.bf16.msra.mxu0 %v1028
    %1392 = vmatpush.bf16.msra.mxu0 %v1024
    %1393 = vmatpush.bf16.msra.mxu0 %v1020
    %1394 = vmatmul.bf16.gmra.mxu0 %v492
    %v1395 = vpop.f32.mrf.mxu0
    %v1396 = vadd.f32 %v628, %v1395
    %v1397 = vpop.f32.mrf.mxu0
    %v1398 = vadd.f32 %v628, %v1397
    %1399 = vdwg.mxu0
    %1400 = vmatpush.bf16.msra.mxu0 %v1080
    %1401 = vmatpush.bf16.msra.mxu0 %v1076
    %1402 = vmatpush.bf16.msra.mxu0 %v1072
    %1403 = vmatpush.bf16.msra.mxu0 %v1068
    %1404 = vmatpush.bf16.msra.mxu0 %v1064
    %1405 = vmatpush.bf16.msra.mxu0 %v1060
    %1406 = vmatpush.bf16.msra.mxu0 %v1056
    %1407 = vmatpush.bf16.msra.mxu0 %v1052
    %1408 = vmatmul.bf16.gmra.mxu0 %v493
    %v1409 = vpop.f32.mrf.mxu0
    %v1410 = vadd.f32 %v1396, %v1409
    %v1411 = vpop.f32.mrf.mxu0
    %v1412 = vadd.f32 %v1398, %v1411
    %1413 = vdwg.mxu0
    %1414 = vmatpush.bf16.msra.mxu0 %v1112
    %1415 = vmatpush.bf16.msra.mxu0 %v1108
    %1416 = vmatpush.bf16.msra.mxu0 %v1104
    %1417 = vmatpush.bf16.msra.mxu0 %v1100
    %1418 = vmatpush.bf16.msra.mxu0 %v1096
    %1419 = vmatpush.bf16.msra.mxu0 %v1092
    %1420 = vmatpush.bf16.msra.mxu0 %v1088
    %1421 = vmatpush.bf16.msra.mxu0 %v1084
    %1422 = vmatmul.bf16.gmra.mxu0 %v494
    %v1423 = vpop.f32.mrf.mxu0
    %v1424 = vadd.f32 %v1410, %v1423
    %v1425 = vpop.f32.mrf.mxu0
    %v1426 = vadd.f32 %v1412, %v1425
    %1427 = vdwg.mxu0
    %1428 = vmatpush.bf16.msra.mxu0 %v1144
    %1429 = vmatpush.bf16.msra.mxu0 %v1140
    %1430 = vmatpush.bf16.msra.mxu0 %v1136
    %1431 = vmatpush.bf16.msra.mxu0 %v1132
    %1432 = vmatpush.bf16.msra.mxu0 %v1128
    %1433 = vmatpush.bf16.msra.mxu0 %v1124
    %1434 = vmatpush.bf16.msra.mxu0 %v1120
    %1435 = vmatpush.bf16.msra.mxu0 %v1116
    %1436 = vmatmul.bf16.gmra.mxu0 %v495
    %v1437 = vpop.f32.mrf.mxu0
    %v1438 = vadd.f32 %v1424, %v1437
    %v1439 = vpop.f32.mrf.mxu0
    %v1440 = vadd.f32 %v1426, %v1439
    %1441 = vdwg.mxu0
    %1442 = vmatpush.bf16.msra.mxu0 %v1049
    %1443 = vmatpush.bf16.msra.mxu0 %v1045
    %1444 = vmatpush.bf16.msra.mxu0 %v1041
    %1445 = vmatpush.bf16.msra.mxu0 %v1037
    %1446 = vmatpush.bf16.msra.mxu0 %v1033
    %1447 = vmatpush.bf16.msra.mxu0 %v1029
    %1448 = vmatpush.bf16.msra.mxu0 %v1025
    %1449 = vmatpush.bf16.msra.mxu0 %v1021
    %1450 = vmatmul.bf16.gmra.mxu0 %v492
    %v1451 = vpop.f32.mrf.mxu0
    %v1452 = vadd.f32 %v629, %v1451
    %v1453 = vpop.f32.mrf.mxu0
    %v1454 = vadd.f32 %v629, %v1453
    %1455 = vdwg.mxu0
    %1456 = vmatpush.bf16.msra.mxu0 %v1081
    %1457 = vmatpush.bf16.msra.mxu0 %v1077
    %1458 = vmatpush.bf16.msra.mxu0 %v1073
    %1459 = vmatpush.bf16.msra.mxu0 %v1069
    %1460 = vmatpush.bf16.msra.mxu0 %v1065
    %1461 = vmatpush.bf16.msra.mxu0 %v1061
    %1462 = vmatpush.bf16.msra.mxu0 %v1057
    %1463 = vmatpush.bf16.msra.mxu0 %v1053
    %1464 = vmatmul.bf16.gmra.mxu0 %v493
    %v1465 = vpop.f32.mrf.mxu0
    %v1466 = vadd.f32 %v1452, %v1465
    %v1467 = vpop.f32.mrf.mxu0
    %v1468 = vadd.f32 %v1454, %v1467
    %1469 = vdwg.mxu0
    %1470 = vmatpush.bf16.msra.mxu0 %v1113
    %1471 = vmatpush.bf16.msra.mxu0 %v1109
    %1472 = vmatpush.bf16.msra.mxu0 %v1105
    %1473 = vmatpush.bf16.msra.mxu0 %v1101
    %1474 = vmatpush.bf16.msra.mxu0 %v1097
    %1475 = vmatpush.bf16.msra.mxu0 %v1093
    %1476 = vmatpush.bf16.msra.mxu0 %v1089
    %1477 = vmatpush.bf16.msra.mxu0 %v1085
    %1478 = vmatmul.bf16.gmra.mxu0 %v494
    %v1479 = vpop.f32.mrf.mxu0
    %v1480 = vadd.f32 %v1466, %v1479
    %v1481 = vpop.f32.mrf.mxu0
    %v1482 = vadd.f32 %v1468, %v1481
    %1483 = vdwg.mxu0
    %1484 = vmatpush.bf16.msra.mxu0 %v1145
    %1485 = vmatpush.bf16.msra.mxu0 %v1141
    %1486 = vmatpush.bf16.msra.mxu0 %v1137
    %1487 = vmatpush.bf16.msra.mxu0 %v1133
    %1488 = vmatpush.bf16.msra.mxu0 %v1129
    %1489 = vmatpush.bf16.msra.mxu0 %v1125
    %1490 = vmatpush.bf16.msra.mxu0 %v1121
    %1491 = vmatpush.bf16.msra.mxu0 %v1117
    %1492 = vmatmul.bf16.gmra.mxu0 %v495
    %v1493 = vpop.f32.mrf.mxu0
    %v1494 = vadd.f32 %v1480, %v1493
    %v1495 = vpop.f32.mrf.mxu0
    %v1496 = vadd.f32 %v1482, %v1495
    %1497 = vdwg.mxu0
    %v1498 = vxor.u32 %v1326, 2147483648
    %v1499 = vxor.u32 %v1382, 2147483648
    %v1500 = vxor.u32 %v1438, 2147483648
    %v1501 = vxor.u32 %v1494, 2147483648
    %v1502 = vxor.u32 %v1328, 2147483648
    %v1503 = vxor.u32 %v1384, 2147483648
    %v1504 = vxor.u32 %v1440, 2147483648
    %v1505 = vxor.u32 %v1496, 2147483648
    %v1506 = vmul.f32 %v1498, 1.442695
    %v1507 = vpow.pop %v1506
    %v1508 = vmul.f32 %v1499, 1.442695
    %v1509 = vpow.pop %v1508
    %v1510 = vmul.f32 %v1500, 1.442695
    %v1511 = vpow.pop %v1510
    %v1512 = vmul.f32 %v1501, 1.442695
    %v1513 = vpow.pop %v1512
    %v1514 = vmul.f32 %v1502, 1.442695
    %v1515 = vpow.pop %v1514
    %v1516 = vmul.f32 %v1503, 1.442695
    %v1517 = vpow.pop %v1516
    %v1518 = vmul.f32 %v1504, 1.442695
    %v1519 = vpow.pop %v1518
    %v1520 = vmul.f32 %v1505, 1.442695
    %v1521 = vpow.pop %v1520
    %v1522 = vadd.f32 %v1507, 1.0
    %v1523 = vadd.f32 %v1509, 1.0
    %v1524 = vadd.f32 %v1511, 1.0
    %v1525 = vadd.f32 %v1513, 1.0
    %v1526 = vadd.f32 %v1515, 1.0
    %v1527 = vadd.f32 %v1517, 1.0
    %v1528 = vadd.f32 %v1519, 1.0
    %v1529 = vadd.f32 %v1521, 1.0
    %v1530 = vrcp.pop %v1522
    %v1531 = vmul.f32 %v1522, %v1530
    %v1532 = vsub.f32 1.0, %v1531
    %v1533 = vmul.f32 %v1530, %v1532
    %v1534 = vadd.f32 %v1530, %v1533
    %vm1535 = vweird.f32 %v1522
    %vm1536 = vweird.f32 %v1530
    %vm1537 = vmor %vm1535, %vm1536
    %v1538 = vsel %vm1537, %v1530, %v1534
    %v1539 = vand.u32 2147483647, %v1522
    %vm1540 = vcmp.eq.f32.partialorder %v1539, 8.507059e+37
    %v1541 = vand.u32 %v1522, 2147483648
    %v1542 = vor.u32 1.1754944e-38, %v1541
    %v1543 = vsel %vm1540, %v1542, %v1538
    %v1544 = vmul.f32 1.0, %v1543
    %v1545 = vrcp.pop %v1523
    %v1546 = vmul.f32 %v1523, %v1545
    %v1547 = vsub.f32 1.0, %v1546
    %v1548 = vmul.f32 %v1545, %v1547
    %v1549 = vadd.f32 %v1545, %v1548
    %vm1550 = vweird.f32 %v1523
    %vm1551 = vweird.f32 %v1545
    %vm1552 = vmor %vm1550, %vm1551
    %v1553 = vsel %vm1552, %v1545, %v1549
    %v1554 = vand.u32 2147483647, %v1523
    %vm1555 = vcmp.eq.f32.partialorder %v1554, 8.507059e+37
    %v1556 = vand.u32 %v1523, 2147483648
    %v1557 = vor.u32 1.1754944e-38, %v1556
    %v1558 = vsel %vm1555, %v1557, %v1553
    %v1559 = vmul.f32 1.0, %v1558
    %v1560 = vrcp.pop %v1524
    %v1561 = vmul.f32 %v1524, %v1560
    %v1562 = vsub.f32 1.0, %v1561
    %v1563 = vmul.f32 %v1560, %v1562
    %v1564 = vadd.f32 %v1560, %v1563
    %vm1565 = vweird.f32 %v1524
    %vm1566 = vweird.f32 %v1560
    %vm1567 = vmor %vm1565, %vm1566
    %v1568 = vsel %vm1567, %v1560, %v1564
    %v1569 = vand.u32 2147483647, %v1524
    %vm1570 = vcmp.eq.f32.partialorder %v1569, 8.507059e+37
    %v1571 = vand.u32 %v1524, 2147483648
    %v1572 = vor.u32 1.1754944e-38, %v1571
    %v1573 = vsel %vm1570, %v1572, %v1568
    %v1574 = vmul.f32 1.0, %v1573
    %v1575 = vrcp.pop %v1525
    %v1576 = vmul.f32 %v1525, %v1575
    %v1577 = vsub.f32 1.0, %v1576
    %v1578 = vmul.f32 %v1575, %v1577
    %v1579 = vadd.f32 %v1575, %v1578
    %vm1580 = vweird.f32 %v1525
    %vm1581 = vweird.f32 %v1575
    %vm1582 = vmor %vm1580, %vm1581
    %v1583 = vsel %vm1582, %v1575, %v1579
    %v1584 = vand.u32 2147483647, %v1525
    %vm1585 = vcmp.eq.f32.partialorder %v1584, 8.507059e+37
    %v1586 = vand.u32 %v1525, 2147483648
    %v1587 = vor.u32 1.1754944e-38, %v1586
    %v1588 = vsel %vm1585, %v1587, %v1583
    %v1589 = vmul.f32 1.0, %v1588
    %v1590 = vrcp.pop %v1526
    %v1591 = vmul.f32 %v1526, %v1590
    %v1592 = vsub.f32 1.0, %v1591
    %v1593 = vmul.f32 %v1590, %v1592
    %v1594 = vadd.f32 %v1590, %v1593
    %vm1595 = vweird.f32 %v1526
    %vm1596 = vweird.f32 %v1590
    %vm1597 = vmor %vm1595, %vm1596
    %v1598 = vsel %vm1597, %v1590, %v1594
    %v1599 = vand.u32 2147483647, %v1526
    %vm1600 = vcmp.eq.f32.partialorder %v1599, 8.507059e+37
    %v1601 = vand.u32 %v1526, 2147483648
    %v1602 = vor.u32 1.1754944e-38, %v1601
    %v1603 = vsel %vm1600, %v1602, %v1598
    %v1604 = vmul.f32 1.0, %v1603
    %v1605 = vrcp.pop %v1527
    %v1606 = vmul.f32 %v1527, %v1605
    %v1607 = vsub.f32 1.0, %v1606
    %v1608 = vmul.f32 %v1605, %v1607
    %v1609 = vadd.f32 %v1605, %v1608
    %vm1610 = vweird.f32 %v1527
    %vm1611 = vweird.f32 %v1605
    %vm1612 = vmor %vm1610, %vm1611
    %v1613 = vsel %vm1612, %v1605, %v1609
    %v1614 = vand.u32 2147483647, %v1527
    %vm1615 = vcmp.eq.f32.partialorder %v1614, 8.507059e+37
    %v1616 = vand.u32 %v1527, 2147483648
    %v1617 = vor.u32 1.1754944e-38, %v1616
    %v1618 = vsel %vm1615, %v1617, %v1613
    %v1619 = vmul.f32 1.0, %v1618
    %v1620 = vrcp.pop %v1528
    %v1621 = vmul.f32 %v1528, %v1620
    %v1622 = vsub.f32 1.0, %v1621
    %v1623 = vmul.f32 %v1620, %v1622
    %v1624 = vadd.f32 %v1620, %v1623
    %vm1625 = vweird.f32 %v1528
    %vm1626 = vweird.f32 %v1620
    %vm1627 = vmor %vm1625, %vm1626
    %v1628 = vsel %vm1627, %v1620, %v1624
    %v1629 = vand.u32 2147483647, %v1528
    %vm1630 = vcmp.eq.f32.partialorder %v1629, 8.507059e+37
    %v1631 = vand.u32 %v1528, 2147483648
    %v1632 = vor.u32 1.1754944e-38, %v1631
    %v1633 = vsel %vm1630, %v1632, %v1628
    %v1634 = vmul.f32 1.0, %v1633
    %v1635 = vrcp.pop %v1529
    %v1636 = vmul.f32 %v1529, %v1635
    %v1637 = vsub.f32 1.0, %v1636
    %v1638 = vmul.f32 %v1635, %v1637
    %v1639 = vadd.f32 %v1635, %v1638
    %vm1640 = vweird.f32 %v1529
    %vm1641 = vweird.f32 %v1635
    %vm1642 = vmor %vm1640, %vm1641
    %v1643 = vsel %vm1642, %v1635, %v1639
    %v1644 = vand.u32 2147483647, %v1529
    %vm1645 = vcmp.eq.f32.partialorder %v1644, 8.507059e+37
    %v1646 = vand.u32 %v1529, 2147483648
    %v1647 = vor.u32 1.1754944e-38, %v1646
    %v1648 = vsel %vm1645, %v1647, %v1643
    %v1649 = vmul.f32 1.0, %v1648
    %v1650 = vmul.f32 %v1326, %v1544
    %v1651 = vmul.f32 %v1382, %v1559
    %v1652 = vmul.f32 %v1438, %v1574
    %v1653 = vmul.f32 %v1494, %v1589
    %v1654 = vmul.f32 %v1328, %v1604
    %v1655 = vmul.f32 %v1384, %v1619
    %v1656 = vmul.f32 %v1440, %v1634
    %v1657 = vmul.f32 %v1496, %v1649
    %v1658 = vpack.c.bf16 %v1654, %v1650
    %v1659 = vpack.c.bf16 %v1655, %v1651
    %v1660 = vpack.c.bf16 %v1656, %v1652
    %v1661 = vpack.c.bf16 %v1657, %v1653
    %v1662 = vld [vmem:[%s7] sm:$0xf]
    %v1663 = vld [vmem:[%s7 + $0x4] sm:$0xf]
    %v1664 = vld [vmem:[%s7 + $0x8] sm:$0xf]
    %v1665 = vld [vmem:[%s7 + $0xc] sm:$0xf]
    %v1666 = vld [vmem:[%s7 + $0x10] sm:$0xf]
    %v1667 = vld [vmem:[%s7 + $0x14] sm:$0xf]
    %v1668 = vld [vmem:[%s7 + $0x18] sm:$0xf]
    %v1669 = vld [vmem:[%s7 + $0x1c] sm:$0xf]
    %v1670 = vld [vmem:[%s7 + $0x20] sm:$0xf]
    %v1671 = vld [vmem:[%s7 + $0x24] sm:$0xf]
    %v1672 = vld [vmem:[%s7 + $0x28] sm:$0xf]
    %v1673 = vld [vmem:[%s7 + $0x2c] sm:$0xf]
    %v1674 = vld [vmem:[%s7 + $0x30] sm:$0xf]
    %v1675 = vld [vmem:[%s7 + $0x34] sm:$0xf]
    %v1676 = vld [vmem:[%s7 + $0x38] sm:$0xf]
    %v1677 = vld [vmem:[%s7 + $0x3c] sm:$0xf]
    %v1678 = vld [vmem:[%s7 + $0x40] sm:$0xf]
    %v1679 = vld [vmem:[%s7 + $0x44] sm:$0xf]
    %v1680 = vld [vmem:[%s7 + $0x48] sm:$0xf]
    %v1681 = vld [vmem:[%s7 + $0x4c] sm:$0xf]
    %v1682 = vld [vmem:[%s7 + $0x50] sm:$0xf]
    %v1683 = vld [vmem:[%s7 + $0x54] sm:$0xf]
    %v1684 = vld [vmem:[%s7 + $0x58] sm:$0xf]
    %v1685 = vld [vmem:[%s7 + $0x5c] sm:$0xf]
    %v1686 = vld [vmem:[%s7 + $0x60] sm:$0xf]
    %v1687 = vld [vmem:[%s7 + $0x64] sm:$0xf]
    %v1688 = vld [vmem:[%s7 + $0x68] sm:$0xf]
    %v1689 = vld [vmem:[%s7 + $0x6c] sm:$0xf]
    %v1690 = vld [vmem:[%s7 + $0x70] sm:$0xf]
    %v1691 = vld [vmem:[%s7 + $0x74] sm:$0xf]
    %v1692 = vld [vmem:[%s7 + $0x78] sm:$0xf]
    %v1693 = vld [vmem:[%s7 + $0x7c] sm:$0xf]
    %v1694 = vld [vmem:[%s7 + $0x80] sm:$0xf]
    %v1695 = vld [vmem:[%s7 + $0x84] sm:$0xf]
    %v1696 = vld [vmem:[%s7 + $0x88] sm:$0xf]
    %v1697 = vld [vmem:[%s7 + $0x8c] sm:$0xf]
    %v1698 = vld [vmem:[%s7 + $0x90] sm:$0xf]
    %v1699 = vld [vmem:[%s7 + $0x94] sm:$0xf]
    %v1700 = vld [vmem:[%s7 + $0x98] sm:$0xf]
    %v1701 = vld [vmem:[%s7 + $0x9c] sm:$0xf]
    %v1702 = vld [vmem:[%s7 + $0xa0] sm:$0xf]
    %v1703 = vld [vmem:[%s7 + $0xa4] sm:$0xf]
    %v1704 = vld [vmem:[%s7 + $0xa8] sm:$0xf]
    %v1705 = vld [vmem:[%s7 + $0xac] sm:$0xf]
    %v1706 = vld [vmem:[%s7 + $0xb0] sm:$0xf]
    %v1707 = vld [vmem:[%s7 + $0xb4] sm:$0xf]
    %v1708 = vld [vmem:[%s7 + $0xb8] sm:$0xf]
    %v1709 = vld [vmem:[%s7 + $0xbc] sm:$0xf]
    %v1710 = vld [vmem:[%s7 + $0xc0] sm:$0xf]
    %v1711 = vld [vmem:[%s7 + $0xc4] sm:$0xf]
    %v1712 = vld [vmem:[%s7 + $0xc8] sm:$0xf]
    %v1713 = vld [vmem:[%s7 + $0xcc] sm:$0xf]
    %v1714 = vld [vmem:[%s7 + $0xd0] sm:$0xf]
    %v1715 = vld [vmem:[%s7 + $0xd4] sm:$0xf]
    %v1716 = vld [vmem:[%s7 + $0xd8] sm:$0xf]
    %v1717 = vld [vmem:[%s7 + $0xdc] sm:$0xf]
    %v1718 = vld [vmem:[%s7 + $0xe0] sm:$0xf]
    %v1719 = vld [vmem:[%s7 + $0xe4] sm:$0xf]
    %v1720 = vld [vmem:[%s7 + $0xe8] sm:$0xf]
    %v1721 = vld [vmem:[%s7 + $0xec] sm:$0xf]
    %v1722 = vld [vmem:[%s7 + $0xf0] sm:$0xf]
    %v1723 = vld [vmem:[%s7 + $0xf4] sm:$0xf]
    %v1724 = vld [vmem:[%s7 + $0xf8] sm:$0xf]
    %v1725 = vld [vmem:[%s7 + $0xfc] sm:$0xf]
    %v1726 = vld [vmem:[%s8] sm:$0x1]
    %v1728 = vperm.slane %v1726, 0
    %v1794 = vunpack.c.l.b16 %v1662
    %v1795 = vunpack.c.l.b16 %v1663
    %v1796 = vunpack.c.l.b16 %v1664
    %v1797 = vunpack.c.l.b16 %v1665
    %v1798 = vunpack.c.l.b16 %v1666
    %v1799 = vunpack.c.l.b16 %v1667
    %v1800 = vunpack.c.l.b16 %v1668
    %v1801 = vunpack.c.l.b16 %v1669
    %v1802 = vunpack.c.l.b16 %v1670
    %v1803 = vunpack.c.l.b16 %v1671
    %v1804 = vunpack.c.l.b16 %v1672
    %v1805 = vunpack.c.l.b16 %v1673
    %v1806 = vunpack.c.l.b16 %v1674
    %v1807 = vunpack.c.l.b16 %v1675
    %v1808 = vunpack.c.l.b16 %v1676
    %v1809 = vunpack.c.l.b16 %v1677
    %v1810 = vunpack.c.l.b16 %v1678
    %v1811 = vunpack.c.l.b16 %v1679
    %v1812 = vunpack.c.l.b16 %v1680
    %v1813 = vunpack.c.l.b16 %v1681
    %v1814 = vunpack.c.l.b16 %v1682
    %v1815 = vunpack.c.l.b16 %v1683
    %v1816 = vunpack.c.l.b16 %v1684
    %v1817 = vunpack.c.l.b16 %v1685
    %v1818 = vunpack.c.l.b16 %v1686
    %v1819 = vunpack.c.l.b16 %v1687
    %v1820 = vunpack.c.l.b16 %v1688
    %v1821 = vunpack.c.l.b16 %v1689
    %v1822 = vunpack.c.l.b16 %v1690
    %v1823 = vunpack.c.l.b16 %v1691
    %v1824 = vunpack.c.l.b16 %v1692
    %v1825 = vunpack.c.l.b16 %v1693
    %v1826 = vunpack.c.l.b16 %v1694
    %v1827 = vunpack.c.l.b16 %v1695
    %v1828 = vunpack.c.l.b16 %v1696
    %v1829 = vunpack.c.l.b16 %v1697
    %v1830 = vunpack.c.l.b16 %v1698
    %v1831 = vunpack.c.l.b16 %v1699
    %v1832 = vunpack.c.l.b16 %v1700
    %v1833 = vunpack.c.l.b16 %v1701
    %v1834 = vunpack.c.l.b16 %v1702
    %v1835 = vunpack.c.l.b16 %v1703
    %v1836 = vunpack.c.l.b16 %v1704
    %v1837 = vunpack.c.l.b16 %v1705
    %v1838 = vunpack.c.l.b16 %v1706
    %v1839 = vunpack.c.l.b16 %v1707
    %v1840 = vunpack.c.l.b16 %v1708
    %v1841 = vunpack.c.l.b16 %v1709
    %v1842 = vunpack.c.l.b16 %v1710
    %v1843 = vunpack.c.l.b16 %v1711
    %v1844 = vunpack.c.l.b16 %v1712
    %v1845 = vunpack.c.l.b16 %v1713
    %v1846 = vunpack.c.l.b16 %v1714
    %v1847 = vunpack.c.l.b16 %v1715
    %v1848 = vunpack.c.l.b16 %v1716
    %v1849 = vunpack.c.l.b16 %v1717
    %v1850 = vunpack.c.l.b16 %v1718
    %v1851 = vunpack.c.l.b16 %v1719
    %v1852 = vunpack.c.l.b16 %v1720
    %v1853 = vunpack.c.l.b16 %v1721
    %v1854 = vunpack.c.l.b16 %v1722
    %v1855 = vunpack.c.l.b16 %v1723
    %v1856 = vunpack.c.l.b16 %v1724
    %v1857 = vunpack.c.l.b16 %v1725
    %v1858 = vpack.c.b16 %v1795, %v1794
    %v1859 = vpack.c.b16 %v1797, %v1796
    %v1860 = vpack.c.b16 %v1799, %v1798
    %v1861 = vpack.c.b16 %v1801, %v1800
    %v1862 = vpack.c.b16 %v1803, %v1802
    %v1863 = vpack.c.b16 %v1805, %v1804
    %v1864 = vpack.c.b16 %v1807, %v1806
    %v1865 = vpack.c.b16 %v1809, %v1808
    %v1866 = vpack.c.b16 %v1811, %v1810
    %v1867 = vpack.c.b16 %v1813, %v1812
    %v1868 = vpack.c.b16 %v1815, %v1814
    %v1869 = vpack.c.b16 %v1817, %v1816
    %v1870 = vpack.c.b16 %v1819, %v1818
    %v1871 = vpack.c.b16 %v1821, %v1820
    %v1872 = vpack.c.b16 %v1823, %v1822
    %v1873 = vpack.c.b16 %v1825, %v1824
    %v1874 = vpack.c.b16 %v1827, %v1826
    %v1875 = vpack.c.b16 %v1829, %v1828
    %v1876 = vpack.c.b16 %v1831, %v1830
    %v1877 = vpack.c.b16 %v1833, %v1832
    %v1878 = vpack.c.b16 %v1835, %v1834
    %v1879 = vpack.c.b16 %v1837, %v1836
    %v1880 = vpack.c.b16 %v1839, %v1838
    %v1881 = vpack.c.b16 %v1841, %v1840
    %v1882 = vpack.c.b16 %v1843, %v1842
    %v1883 = vpack.c.b16 %v1845, %v1844
    %v1884 = vpack.c.b16 %v1847, %v1846
    %v1885 = vpack.c.b16 %v1849, %v1848
    %v1886 = vpack.c.b16 %v1851, %v1850
    %v1887 = vpack.c.b16 %v1853, %v1852
    %v1888 = vpack.c.b16 %v1855, %v1854
    %v1889 = vpack.c.b16 %v1857, %v1856
    %1922 = vmatpush.bf16.msra.mxu0 %v1865
    %1923 = vmatpush.bf16.msra.mxu0 %v1864
    %1924 = vmatpush.bf16.msra.mxu0 %v1863
    %1925 = vmatpush.bf16.msra.mxu0 %v1862
    %1926 = vmatpush.bf16.msra.mxu0 %v1861
    %1927 = vmatpush.bf16.msra.mxu0 %v1860
    %1928 = vmatpush.bf16.msra.mxu0 %v1859
    %1929 = vmatpush.bf16.msra.mxu0 %v1858
    %1930 = vmatmul.bf16.gmra.mxu0 %v1658
    %v1931 = vpop.f32.mrf.mxu0
    %v1932 = vadd.f32 %v1728, %v1931
    %v1933 = vpop.f32.mrf.mxu0
    %v1934 = vadd.f32 %v1728, %v1933
    %1935 = vdwg.mxu0
    %1936 = vmatpush.bf16.msra.mxu0 %v1873
    %1937 = vmatpush.bf16.msra.mxu0 %v1872
    %1938 = vmatpush.bf16.msra.mxu0 %v1871
    %1939 = vmatpush.bf16.msra.mxu0 %v1870
    %1940 = vmatpush.bf16.msra.mxu0 %v1869
    %1941 = vmatpush.bf16.msra.mxu0 %v1868
    %1942 = vmatpush.bf16.msra.mxu0 %v1867
    %1943 = vmatpush.bf16.msra.mxu0 %v1866
    %1944 = vmatmul.bf16.gmra.mxu0 %v1659
    %v1945 = vpop.f32.mrf.mxu0
    %v1946 = vadd.f32 %v1932, %v1945
    %v1947 = vpop.f32.mrf.mxu0
    %v1948 = vadd.f32 %v1934, %v1947
    %1949 = vdwg.mxu0
    %1950 = vmatpush.bf16.msra.mxu0 %v1881
    %1951 = vmatpush.bf16.msra.mxu0 %v1880
    %1952 = vmatpush.bf16.msra.mxu0 %v1879
    %1953 = vmatpush.bf16.msra.mxu0 %v1878
    %1954 = vmatpush.bf16.msra.mxu0 %v1877
    %1955 = vmatpush.bf16.msra.mxu0 %v1876
    %1956 = vmatpush.bf16.msra.mxu0 %v1875
    %1957 = vmatpush.bf16.msra.mxu0 %v1874
    %1958 = vmatmul.bf16.gmra.mxu0 %v1660
    %v1959 = vpop.f32.mrf.mxu0
    %v1960 = vadd.f32 %v1946, %v1959
    %v1961 = vpop.f32.mrf.mxu0
    %v1962 = vadd.f32 %v1948, %v1961
    %1963 = vdwg.mxu0
    %1964 = vmatpush.bf16.msra.mxu0 %v1889
    %1965 = vmatpush.bf16.msra.mxu0 %v1888
    %1966 = vmatpush.bf16.msra.mxu0 %v1887
    %1967 = vmatpush.bf16.msra.mxu0 %v1886
    %1968 = vmatpush.bf16.msra.mxu0 %v1885
    %1969 = vmatpush.bf16.msra.mxu0 %v1884
    %1970 = vmatpush.bf16.msra.mxu0 %v1883
    %1971 = vmatpush.bf16.msra.mxu0 %v1882
    %1972 = vmatmul.bf16.gmra.mxu0 %v1661
    %v1973 = vpop.f32.mrf.mxu0
    %v1974 = vadd.f32 %v1960, %v1973
    %v1975 = vpop.f32.mrf.mxu0
    %v1976 = vadd.f32 %v1962, %v1975
    %1977 = vdwg.mxu0
    %vm1978 = vcmask 261120
    %1979 = vst.msk [vmem:[#allocation5] sm:$0xff] %vm1978, %v1974
    %1980 = vst.msk [vmem:[#allocation5 + $0x8] sm:$0xff] %vm1978, %v1976
    // Predicated region
    $region42: #{tpu_custom_call.1} parent=1 // pred_check
      _
    $region43: #{tpu_custom_call.1} parent=1 // pred_check_branch
      %1982 = sbr.rel (0) target = $region45
    $region44: #{tpu_custom_call.1} parent=1 // pred_region
      %1984 = vsyncadd [#allocation4], 0
      %s1985 = sshll.u32 [#allocation5], 4
      %s1986 = int_to_ptr.vmem [resolvable:$true] %s1985
      %s1987 = sshll.u32 %s9, 4
      %s1988 = int_to_ptr.hbm [resolvable:$true] %s1987
      %1993 = dma.vmem_to_hbm [thread:$0]  %s1986, 256, %s1988, [#allocation4], 128, 128, 8
    $region45: #{tpu_custom_call.1} parent=1 // pred_fallthru
      _
    // Predicated region
    $region46: #{tpu_custom_call.1} parent=1 // pred_check
      _
    $region47: #{tpu_custom_call.1} parent=1 // pred_check_branch
      %1995 = sbr.rel (0) target = $region49
    $region48: #{tpu_custom_call.1} parent=1 // pred_region
      %1997 = dma.done [#allocation4], 256
    $region49: #{tpu_custom_call.1} parent=1 // pred_fallthru
      _
    %1998 = vsyncpa [#allocation3], 1
    %1999 = vsyncpa [#allocation4], 1

</llo_original>
